<compile_context>
chip_gen: v7x
topology: tpu7x:2x2x1
jax: 0.10.0
libtpu: 0.0.40
codegen_flags: <defaults>
</compile_context>

<pallas_src>
import functools

import numpy as np
import jax
import jax.numpy as jnp
from jax.experimental import pallas as pl
from jax.experimental.pallas import tpu as pltpu

HEAD_LANES = 128  # fused head output width (4A + 2A + A = 63 real lanes, zero-padded)


# ------------------------- anchor generation (numpy glue, as in reference) -----------

def generate_anchor_base(base_size=16, anchor_scales=(8, 16, 32), ratios=(0.5, 1, 2)):
    anchor_base = np.zeros((len(anchor_scales) * len(ratios), 4), dtype=np.float32)
    index = 0
    for i in ratios:
        for j in anchor_scales:
            h = base_size * j * np.sqrt(i)
            w = base_size * j * np.sqrt(1.0 / i)
            anchor_base[index, 0] = -h / 2.0
            anchor_base[index, 1] = -w / 2.0
            anchor_base[index, 2] = h / 2.0
            anchor_base[index, 3] = w / 2.0
            index += 1
    return anchor_base


def _enumerate_shifted_anchor(anchor_base, feat_stride, height, width):
    shift_x = np.arange(0, width * feat_stride, feat_stride)
    shift_y = np.arange(0, height * feat_stride, feat_stride)
    shift_x, shift_y = np.meshgrid(shift_x, shift_y)
    shift = np.stack((shift_x.ravel(), shift_y.ravel(),
                      shift_x.ravel(), shift_y.ravel()), axis=1)
    A = anchor_base.shape[0]
    K = shift.shape[0]
    anchor = anchor_base.reshape((1, A, 4)) + shift.reshape((K, 1, 4))
    return anchor.reshape((K * A, 4)).astype(np.float32)


# ------------------------------------ Pallas kernel ----------------------------------

def rpn_kernel(x_ref, w1_ref, b1_ref, wh_ref, bh_ref, out_ref, *,
               wp, n_rows, fg_start, fg_len):
    """One grid step = one batch element.

    x_ref  : (1, R, Cin)       zero-padded input flattened over (H+3, W+2) rows (bf16)
    w1_ref : (9, Cin, Cmid)    3x3 conv weights, tap-major matmul form (bf16)
    b1_ref : (1, Cmid)         conv bias (f32)
    wh_ref : (Cmid, 128)       fused head [loc | score | (fg-bg) | zero-pad] (bf16)
    bh_ref : (1, 128)          fused head bias (f32)
    out_ref: (1, n_rows, 128)  fused head output on the width-padded row grid (f32)

    On the row-flattened padded image, conv tap (ky, kx) of the 3x3 / stride-1 /
    pad-1 conv is simply the row window starting at offset ky*wp + kx, so each tap
    is one (n_rows, Cin) x (Cin, Cmid) MXU matmul — no reshapes, no im2col in HBM.
    Output rows whose x >= W are garbage and are dropped by the wrapper.
    """
    # 3x3 conv as 9 accumulated MXU matmuls (acc seeded by the first tap) + ReLU
    acc = jnp.dot(x_ref[0, 0:n_rows, :], w1_ref[0],
                  preferred_element_type=jnp.float32)
    for t in range(1, 9):  # static unroll
        off = (t // 3) * wp + (t % 3)
        acc = acc + jnp.dot(x_ref[0, off:off + n_rows, :], w1_ref[t],
                            preferred_element_type=jnp.float32)

    mid = jnp.maximum(acc + b1_ref[...], 0.0).astype(wh_ref.dtype)  # (n_rows, Cmid) bf16

    # single lane-dense fused head matmul: [loc(4A) | score(2A) | fg-bg(A) | 0-pad]
    heads = jnp.dot(mid, wh_ref[...], preferred_element_type=jnp.float32) + bh_ref[...]

    # softmax([bg, fg])[1] == sigmoid(fg - bg); the fg lanes already hold (fg - bg)
    lane = jax.lax.broadcasted_iota(jnp.int32, heads.shape, 1)
    is_fg = (lane >= fg_start) & (lane < fg_start + fg_len)
    out_ref[0] = jnp.where(is_fg, jax.nn.sigmoid(heads), heads)


# ------------------------------------ wrapper -----------------------------------------

def rpn_forward(x_nchw, params, img_size=None, scale=1.0, feat_stride=16):
    """Forward pass of RegionProposalsNetwork.

    Returns (rpn_locs [n, h*w*A, 4], rpn_scores [n, h*w*A, 2],
             rpn_fg_scores [n, h*w*A], anchor [h*w*A, 4]).
    """
    w1, b1, wl, bl, ws, bs = params
    n, cin, h, w = x_nchw.shape
    cmid = w1.shape[2]
    A = ws.shape[1] // 2
    wp = w + 2                    # padded width
    n_rows = h * wp               # conv output rows on the width-padded grid
    n_head = 7 * A                # 4A loc + 2A score + A fg
    assert n_head <= HEAD_LANES

    # fused lane-dense head: [ loc | score | (fg - bg) | zero pad ] -> 128 lanes
    wdiff = ws[:, 1::2] - ws[:, 0::2]
    bdiff = bs[:, 1::2] - bs[:, 0::2]
    wh = jnp.pad(jnp.concatenate([wl, ws, wdiff], axis=1),
                 ((0, 0), (0, HEAD_LANES - n_head))).astype(jnp.bfloat16)
    bh = jnp.pad(jnp.concatenate([bl, bs, bdiff], axis=1),
                 ((0, 0), (0, HEAD_LANES - n_head))).astype(jnp.float32)

    # zero-padded NHWC input, flattened to rows; read once, taps formed in-kernel.
    # (pad bottom by 2 rows so the kx/ky-shifted windows never run off the end)
    x_nhwc = jnp.transpose(x_nchw, (0, 2, 3, 1))
    xpad = jnp.pad(x_nhwc, ((0, 0), (1, 2), (1, 1), (0, 0)))
    r_rows = (h + 3) * wp
    xf = xpad.reshape(n, r_rows, cin).astype(jnp.bfloat16)

    w1_b = w1.astype(jnp.bfloat16)
    b1_f = b1.astype(jnp.float32)

    kernel = functools.partial(rpn_kernel, wp=wp, n_rows=n_rows,
                               fg_start=6 * A, fg_len=A)

    # cost / VMEM hints
    flops = 2 * n * n_rows * cmid * (9 * cin + HEAD_LANES)
    transcendentals = n * n_rows * HEAD_LANES
    bytes_accessed = (xf.size * 2 + w1_b.size * 2 + wh.size * 2
                      + b1_f.size * 4 + bh.size * 4 + n * n_rows * HEAD_LANES * 4)
    est = (2 * r_rows * cin * 2                 # double-buffered input block (bf16)
           + 9 * cin * cmid * 2 + cmid * 4      # conv weights + bias
           + cmid * HEAD_LANES * 2 + HEAD_LANES * 4
           + 2 * n_rows * HEAD_LANES * 4        # double-buffered output block
           + n_rows * (cin * 2 + cmid * 4 + cmid * 2 + HEAD_LANES * 4))  # temporaries
    vmem_limit = int(min(max(4 * est, 16 << 20), 48 << 20))

    # TODO(synk): for production feature maps (e.g. 38x50x512) add a row-tile grid
    # axis with a 2-row halo (manual DMA) so each block fits v7x's 64 MiB VMEM.
    grid_spec = pltpu.PrefetchScalarGridSpec(
        num_scalar_prefetch=0,
        grid=(n,),
        in_specs=[
            pl.BlockSpec((1, r_rows, cin), lambda i: (i, 0, 0)),
            pl.BlockSpec((9, cin, cmid), lambda i: (0, 0, 0)),
            pl.BlockSpec((1, cmid), lambda i: (0, 0)),
            pl.BlockSpec((cmid, HEAD_LANES), lambda i: (0, 0)),
            pl.BlockSpec((1, HEAD_LANES), lambda i: (0, 0)),
        ],
        out_specs=pl.BlockSpec((1, n_rows, HEAD_LANES), lambda i: (i, 0, 0)),
    )

    out = pl.pallas_call(
        kernel,
        out_shape=jax.ShapeDtypeStruct((n, n_rows, HEAD_LANES), jnp.float32),
        grid_spec=grid_spec,
        compiler_params=pltpu.CompilerParams(
            dimension_semantics=("parallel",),
            vmem_limit_bytes=vmem_limit),
        cost_estimate=pl.CostEstimate(flops=flops,
                                      transcendentals=transcendentals,
                                      bytes_accessed=bytes_accessed),
    )(xf, w1_b, b1_f, wh, bh)

    # glue: drop width-pad garbage rows, split fused head, match PyTorch
    # permute(0,2,3,1).view(n,-1,k) semantics.
    head = out.reshape(n, h, wp, HEAD_LANES)[:, :, :w, :].reshape(n, h * w, HEAD_LANES)
    rpn_locs = head[:, :, :4 * A].reshape(n, h * w * A, 4)
    rpn_scores = head[:, :, 4 * A:6 * A].reshape(n, h * w * A, 2)
    rpn_fg_scores = head[:, :, 6 * A:7 * A].reshape(n, h * w * A)

    anchor = _enumerate_shifted_anchor(generate_anchor_base(), feat_stride, h, w)

    # TODO(synk): ProposalCreator (loc2bbox + clipping + min-size filter + argsort + NMS)
    # produces data-dependent dynamic shapes (rois / rois_indices) and is not computed.
    return rpn_locs, rpn_scores, rpn_fg_scores, anchor


# ------------------------------------ reference (plain JAX, f32) ----------------------

def rpn_reference(x_nchw, params):
    w1, b1, wl, bl, ws, bs = params
    n, cin, h, w = x_nchw.shape
    A = ws.shape[1] // 2
    x_nhwc = jnp.transpose(x_nchw, (0, 2, 3, 1))
    xp = jnp.pad(x_nhwc, ((0, 0), (1, 1), (1, 1), (0, 0)))
    acc = jnp.zeros((n, h, w, w1.shape[2]), jnp.float32)
    for ky in range(3):
        for kx in range(3):
            acc = acc + jnp.einsum('nhwc,cd->nhwd',
                                   xp[:, ky:ky + h, kx:kx + w, :], w1[ky * 3 + kx])
    mid = jax.nn.relu(acc + b1[0])
    locs = (jnp.einsum('nhwc,cd->nhwd', mid, wl) + bl[0]).reshape(n, h * w * A, 4)
    scores = (jnp.einsum('nhwc,cd->nhwd', mid, ws) + bs[0]).reshape(n, h * w * A, 2)
    fg = jax.nn.softmax(scores, axis=-1)[:, :, 1]
    return locs, scores, fg


# ------------------------------------ main ---------------------------------------------

if __name__ == "__main__":
    # small deterministic config: batch=2, in_channels=16, mid_channels=32, spatial 8x8
    N, CIN, CMID, H, W = 2, 16, 32, 8, 8
    A = 9  # 3 ratios x 3 scales

    key = jax.random.PRNGKey(0)
    k1, k2, k3, kx = jax.random.split(key, 4)

    # deterministic "normal_init(m, 0, 0.01)" parameters, PyTorch conv shapes
    conv1_w = jax.random.normal(k1, (CMID, CIN, 3, 3), jnp.float32) * 0.01
    conv1_b = jnp.zeros((CMID,), jnp.float32)
    score_w = jax.random.normal(k2, (2 * A, CMID, 1, 1), jnp.float32) * 0.01
    score_b = jnp.zeros((2 * A,), jnp.float32)
    loc_w = jax.random.normal(k3, (4 * A, CMID, 1, 1), jnp.float32) * 0.01
    loc_b = jnp.zeros((4 * A,), jnp.float32)

    # convert to matmul form used by the kernel
    w1 = jnp.transpose(conv1_w, (2, 3, 1, 0)).reshape(9, CIN, CMID)  # [tap, Cin, Cmid]
    b1 = conv1_b.reshape(1, CMID)
    wl = loc_w[:, :, 0, 0].T                                         # [Cmid, 36]
    bl = loc_b.reshape(1, 4 * A)
    ws = score_w[:, :, 0, 0].T                                       # [Cmid, 18]
    bs = score_b.reshape(1, 2 * A)
    params = (w1, b1, wl, bl, ws, bs)

    x = jax.random.normal(kx, (N, CIN, H, W), jnp.float32)

    rpn_locs, rpn_scores, rpn_fg_scores, anchor = rpn_forward(
        x, params, img_size=(H * 16, W * 16), scale=1.0, feat_stride=16)
    jax.block_until_ready((rpn_locs, rpn_scores, rpn_fg_scores))

    # sanity check against a plain-JAX f32 reference (kernel runs bf16 on the MXU)
    ref_locs, ref_scores, ref_fg = rpn_reference(x, params)
    np.testing.assert_allclose(np.asarray(rpn_locs), np.asarray(ref_locs),
                               rtol=5e-2, atol=2e-3)
    np.testing.assert_allclose(np.asarray(rpn_scores), np.asarray(ref_scores),
                               rtol=5e-2, atol=2e-3)
    np.testing.assert_allclose(np.asarray(rpn_fg_scores), np.asarray(ref_fg),
                               rtol=5e-2, atol=2e-3)
    assert rpn_locs.shape == (N, H * W * A, 4)
    assert rpn_scores.shape == (N, H * W * A, 2)
    assert rpn_fg_scores.shape == (N, H * W * A)
    assert anchor.shape == (H * W * A, 4)

    print("KERNEL_OK")
</pallas_src>

<mosaic_0001>
module attributes {stable_mosaic.version = 11 : i64} {
  func.func @rpn_kernel(%arg0: i32, %arg1: memref<1x110x16xbf16, #tpu.memory_space<vmem>>, %arg2: memref<9x16x32xbf16, #tpu.memory_space<vmem>>, %arg3: memref<1x32xf32, #tpu.memory_space<vmem>>, %arg4: memref<32x128xbf16, #tpu.memory_space<vmem>>, %arg5: memref<1x128xf32, #tpu.memory_space<vmem>>, %arg6: memref<1x80x128xf32, #tpu.memory_space<vmem>>) attributes {dimension_semantics = [#tpu.dimension_semantics<parallel>], iteration_bounds = array<i64: 2>, scalar_prefetch = 0 : i64, scratch_operands = 0 : i64, tpu.core_type = #tpu.core_type<tc>, window_params = [{transform_indices = @transform_0, window_bounds = array<i64: 1, 110, 16>}, {pipeline_mode = #tpu.pipeline_mode<synchronous>, transform_indices = @transform_1, window_bounds = array<i64: 9, 16, 32>}, {pipeline_mode = #tpu.pipeline_mode<synchronous>, transform_indices = @transform_2, window_bounds = array<i64: 1, 32>}, {pipeline_mode = #tpu.pipeline_mode<synchronous>, transform_indices = @transform_3, window_bounds = array<i64: 32, 128>}, {pipeline_mode = #tpu.pipeline_mode<synchronous>, transform_indices = @transform_4, window_bounds = array<i64: 1, 128>}, {transform_indices = @transform_5, window_bounds = array<i64: 1, 80, 128>}]} {
    %c0 = arith.constant 0 : index
    %c0_0 = arith.constant 0 : index
    %c0_1 = arith.constant 0 : index
    %0 = vector.load %arg1[%c0, %c0_0, %c0_1] : memref<1x110x16xbf16, #tpu.memory_space<vmem>>, vector<1x80x16xbf16>
    %1 = vector.shape_cast %0 : vector<1x80x16xbf16> to vector<80x16xbf16>
    %c0_2 = arith.constant 0 : index
    %c0_3 = arith.constant 0 : index
    %c0_4 = arith.constant 0 : index
    %2 = vector.load %arg2[%c0_2, %c0_3, %c0_4] : memref<9x16x32xbf16, #tpu.memory_space<vmem>>, vector<1x16x32xbf16>
    %3 = vector.shape_cast %2 : vector<1x16x32xbf16> to vector<16x32xbf16>
    %cst = arith.constant dense<0.000000e+00> : vector<80x32xf32>
    %4 = tpu.matmul %1, %3, %cst {dimension_numbers = #tpu.dot_dimension_numbers<[1], [0], [0], [1], [0, 0, 1, 1], [], []>} : vector<80x16xbf16>, vector<16x32xbf16>, vector<80x32xf32> -> vector<80x32xf32>
    %c0_5 = arith.constant 0 : index
    %c1 = arith.constant 1 : index
    %c0_6 = arith.constant 0 : index
    %5 = vector.load %arg1[%c0_5, %c1, %c0_6] : memref<1x110x16xbf16, #tpu.memory_space<vmem>>, vector<1x80x16xbf16>
    %6 = vector.shape_cast %5 : vector<1x80x16xbf16> to vector<80x16xbf16>
    %c1_7 = arith.constant 1 : index
    %c0_8 = arith.constant 0 : index
    %c0_9 = arith.constant 0 : index
    %7 = vector.load %arg2[%c1_7, %c0_8, %c0_9] : memref<9x16x32xbf16, #tpu.memory_space<vmem>>, vector<1x16x32xbf16>
    %8 = vector.shape_cast %7 : vector<1x16x32xbf16> to vector<16x32xbf16>
    %cst_10 = arith.constant dense<0.000000e+00> : vector<80x32xf32>
    %9 = tpu.matmul %6, %8, %cst_10 {dimension_numbers = #tpu.dot_dimension_numbers<[1], [0], [0], [1], [0, 0, 1, 1], [], []>} : vector<80x16xbf16>, vector<16x32xbf16>, vector<80x32xf32> -> vector<80x32xf32>
    %10 = arith.addf %4, %9 : vector<80x32xf32>
    %c0_11 = arith.constant 0 : index
    %c2 = arith.constant 2 : index
    %c0_12 = arith.constant 0 : index
    %11 = vector.load %arg1[%c0_11, %c2, %c0_12] : memref<1x110x16xbf16, #tpu.memory_space<vmem>>, vector<1x80x16xbf16>
    %12 = vector.shape_cast %11 : vector<1x80x16xbf16> to vector<80x16xbf16>
    %c2_13 = arith.constant 2 : index
    %c0_14 = arith.constant 0 : index
    %c0_15 = arith.constant 0 : index
    %13 = vector.load %arg2[%c2_13, %c0_14, %c0_15] : memref<9x16x32xbf16, #tpu.memory_space<vmem>>, vector<1x16x32xbf16>
    %14 = vector.shape_cast %13 : vector<1x16x32xbf16> to vector<16x32xbf16>
    %cst_16 = arith.constant dense<0.000000e+00> : vector<80x32xf32>
    %15 = tpu.matmul %12, %14, %cst_16 {dimension_numbers = #tpu.dot_dimension_numbers<[1], [0], [0], [1], [0, 0, 1, 1], [], []>} : vector<80x16xbf16>, vector<16x32xbf16>, vector<80x32xf32> -> vector<80x32xf32>
    %16 = arith.addf %10, %15 : vector<80x32xf32>
    %c0_17 = arith.constant 0 : index
    %c10 = arith.constant 10 : index
    %c0_18 = arith.constant 0 : index
    %17 = vector.load %arg1[%c0_17, %c10, %c0_18] : memref<1x110x16xbf16, #tpu.memory_space<vmem>>, vector<1x80x16xbf16>
    %18 = vector.shape_cast %17 : vector<1x80x16xbf16> to vector<80x16xbf16>
    %c3 = arith.constant 3 : index
    %c0_19 = arith.constant 0 : index
    %c0_20 = arith.constant 0 : index
    %19 = vector.load %arg2[%c3, %c0_19, %c0_20] : memref<9x16x32xbf16, #tpu.memory_space<vmem>>, vector<1x16x32xbf16>
    %20 = vector.shape_cast %19 : vector<1x16x32xbf16> to vector<16x32xbf16>
    %cst_21 = arith.constant dense<0.000000e+00> : vector<80x32xf32>
    %21 = tpu.matmul %18, %20, %cst_21 {dimension_numbers = #tpu.dot_dimension_numbers<[1], [0], [0], [1], [0, 0, 1, 1], [], []>} : vector<80x16xbf16>, vector<16x32xbf16>, vector<80x32xf32> -> vector<80x32xf32>
    %22 = arith.addf %16, %21 : vector<80x32xf32>
    %c0_22 = arith.constant 0 : index
    %c11 = arith.constant 11 : index
    %c0_23 = arith.constant 0 : index
    %23 = vector.load %arg1[%c0_22, %c11, %c0_23] : memref<1x110x16xbf16, #tpu.memory_space<vmem>>, vector<1x80x16xbf16>
    %24 = vector.shape_cast %23 : vector<1x80x16xbf16> to vector<80x16xbf16>
    %c4 = arith.constant 4 : index
    %c0_24 = arith.constant 0 : index
    %c0_25 = arith.constant 0 : index
    %25 = vector.load %arg2[%c4, %c0_24, %c0_25] : memref<9x16x32xbf16, #tpu.memory_space<vmem>>, vector<1x16x32xbf16>
    %26 = vector.shape_cast %25 : vector<1x16x32xbf16> to vector<16x32xbf16>
    %cst_26 = arith.constant dense<0.000000e+00> : vector<80x32xf32>
    %27 = tpu.matmul %24, %26, %cst_26 {dimension_numbers = #tpu.dot_dimension_numbers<[1], [0], [0], [1], [0, 0, 1, 1], [], []>} : vector<80x16xbf16>, vector<16x32xbf16>, vector<80x32xf32> -> vector<80x32xf32>
    %28 = arith.addf %22, %27 : vector<80x32xf32>
    %c0_27 = arith.constant 0 : index
    %c12 = arith.constant 12 : index
    %c0_28 = arith.constant 0 : index
    %29 = vector.load %arg1[%c0_27, %c12, %c0_28] : memref<1x110x16xbf16, #tpu.memory_space<vmem>>, vector<1x80x16xbf16>
    %30 = vector.shape_cast %29 : vector<1x80x16xbf16> to vector<80x16xbf16>
    %c5 = arith.constant 5 : index
    %c0_29 = arith.constant 0 : index
    %c0_30 = arith.constant 0 : index
    %31 = vector.load %arg2[%c5, %c0_29, %c0_30] : memref<9x16x32xbf16, #tpu.memory_space<vmem>>, vector<1x16x32xbf16>
    %32 = vector.shape_cast %31 : vector<1x16x32xbf16> to vector<16x32xbf16>
    %cst_31 = arith.constant dense<0.000000e+00> : vector<80x32xf32>
    %33 = tpu.matmul %30, %32, %cst_31 {dimension_numbers = #tpu.dot_dimension_numbers<[1], [0], [0], [1], [0, 0, 1, 1], [], []>} : vector<80x16xbf16>, vector<16x32xbf16>, vector<80x32xf32> -> vector<80x32xf32>
    %34 = arith.addf %28, %33 : vector<80x32xf32>
    %c0_32 = arith.constant 0 : index
    %c20 = arith.constant 20 : index
    %c0_33 = arith.constant 0 : index
    %35 = vector.load %arg1[%c0_32, %c20, %c0_33] : memref<1x110x16xbf16, #tpu.memory_space<vmem>>, vector<1x80x16xbf16>
    %36 = vector.shape_cast %35 : vector<1x80x16xbf16> to vector<80x16xbf16>
    %c6 = arith.constant 6 : index
    %c0_34 = arith.constant 0 : index
    %c0_35 = arith.constant 0 : index
    %37 = vector.load %arg2[%c6, %c0_34, %c0_35] : memref<9x16x32xbf16, #tpu.memory_space<vmem>>, vector<1x16x32xbf16>
    %38 = vector.shape_cast %37 : vector<1x16x32xbf16> to vector<16x32xbf16>
    %cst_36 = arith.constant dense<0.000000e+00> : vector<80x32xf32>
    %39 = tpu.matmul %36, %38, %cst_36 {dimension_numbers = #tpu.dot_dimension_numbers<[1], [0], [0], [1], [0, 0, 1, 1], [], []>} : vector<80x16xbf16>, vector<16x32xbf16>, vector<80x32xf32> -> vector<80x32xf32>
    %40 = arith.addf %34, %39 : vector<80x32xf32>
    %c0_37 = arith.constant 0 : index
    %c21 = arith.constant 21 : index
    %c0_38 = arith.constant 0 : index
    %41 = vector.load %arg1[%c0_37, %c21, %c0_38] : memref<1x110x16xbf16, #tpu.memory_space<vmem>>, vector<1x80x16xbf16>
    %42 = vector.shape_cast %41 : vector<1x80x16xbf16> to vector<80x16xbf16>
    %c7 = arith.constant 7 : index
    %c0_39 = arith.constant 0 : index
    %c0_40 = arith.constant 0 : index
    %43 = vector.load %arg2[%c7, %c0_39, %c0_40] : memref<9x16x32xbf16, #tpu.memory_space<vmem>>, vector<1x16x32xbf16>
    %44 = vector.shape_cast %43 : vector<1x16x32xbf16> to vector<16x32xbf16>
    %cst_41 = arith.constant dense<0.000000e+00> : vector<80x32xf32>
    %45 = tpu.matmul %42, %44, %cst_41 {dimension_numbers = #tpu.dot_dimension_numbers<[1], [0], [0], [1], [0, 0, 1, 1], [], []>} : vector<80x16xbf16>, vector<16x32xbf16>, vector<80x32xf32> -> vector<80x32xf32>
    %46 = arith.addf %40, %45 : vector<80x32xf32>
    %c0_42 = arith.constant 0 : index
    %c22 = arith.constant 22 : index
    %c0_43 = arith.constant 0 : index
    %47 = vector.load %arg1[%c0_42, %c22, %c0_43] : memref<1x110x16xbf16, #tpu.memory_space<vmem>>, vector<1x80x16xbf16>
    %48 = vector.shape_cast %47 : vector<1x80x16xbf16> to vector<80x16xbf16>
    %c8 = arith.constant 8 : index
    %c0_44 = arith.constant 0 : index
    %c0_45 = arith.constant 0 : index
    %49 = vector.load %arg2[%c8, %c0_44, %c0_45] : memref<9x16x32xbf16, #tpu.memory_space<vmem>>, vector<1x16x32xbf16>
    %50 = vector.shape_cast %49 : vector<1x16x32xbf16> to vector<16x32xbf16>
    %cst_46 = arith.constant dense<0.000000e+00> : vector<80x32xf32>
    %51 = tpu.matmul %48, %50, %cst_46 {dimension_numbers = #tpu.dot_dimension_numbers<[1], [0], [0], [1], [0, 0, 1, 1], [], []>} : vector<80x16xbf16>, vector<16x32xbf16>, vector<80x32xf32> -> vector<80x32xf32>
    %52 = arith.addf %46, %51 : vector<80x32xf32>
    %c0_47 = arith.constant 0 : index
    %c0_48 = arith.constant 0 : index
    %53 = vector.load %arg3[%c0_47, %c0_48] : memref<1x32xf32, #tpu.memory_space<vmem>>, vector<1x32xf32>
    %54 = vector.broadcast %53 : vector<1x32xf32> to vector<80x32xf32>
    %55 = arith.addf %52, %54 : vector<80x32xf32>
    %cst_49 = arith.constant 0.000000e+00 : f32
    %56 = vector.broadcast %cst_49 : f32 to vector<80x32xf32>
    %57 = arith.maximumf %55, %56 : vector<80x32xf32>
    %58 = arith.truncf %57 : vector<80x32xf32> to vector<80x32xbf16>
    %c0_50 = arith.constant 0 : index
    %c0_51 = arith.constant 0 : index
    %59 = vector.load %arg4[%c0_50, %c0_51] : memref<32x128xbf16, #tpu.memory_space<vmem>>, vector<32x128xbf16>
    %cst_52 = arith.constant dense<0.000000e+00> : vector<80x128xf32>
    %60 = tpu.matmul %58, %59, %cst_52 {dimension_numbers = #tpu.dot_dimension_numbers<[1], [0], [0], [1], [0, 0, 1, 1], [], []>} : vector<80x32xbf16>, vector<32x128xbf16>, vector<80x128xf32> -> vector<80x128xf32>
    %c0_53 = arith.constant 0 : index
    %c0_54 = arith.constant 0 : index
    %61 = vector.load %arg5[%c0_53, %c0_54] : memref<1x128xf32, #tpu.memory_space<vmem>>, vector<1x128xf32>
    %62 = vector.broadcast %61 : vector<1x128xf32> to vector<80x128xf32>
    %63 = arith.addf %60, %62 : vector<80x128xf32>
    %64 = tpu.iota {dimensions = array<i32: 1>} : vector<80x128xi32>
    %c54_i32 = arith.constant 54 : i32
    %65 = vector.broadcast %c54_i32 : i32 to vector<80x128xi32>
    %66 = arith.cmpi sge, %64, %65 : vector<80x128xi32>
    %c63_i32 = arith.constant 63 : i32
    %67 = vector.broadcast %c63_i32 : i32 to vector<80x128xi32>
    %68 = arith.cmpi slt, %64, %67 : vector<80x128xi32>
    %69 = arith.andi %66, %68 : vector<80x128xi1>
    %70 = arith.negf %63 : vector<80x128xf32>
    %71 = math.exp %70 : vector<80x128xf32>
    %cst_55 = arith.constant 1.000000e+00 : f32
    %72 = vector.broadcast %cst_55 : f32 to vector<80x128xf32>
    %73 = arith.addf %72, %71 : vector<80x128xf32>
    %74 = arith.divf %72, %73 : vector<80x128xf32>
    %75 = arith.select %69, %74, %63 : vector<80x128xi1>, vector<80x128xf32>
    %c0_56 = arith.constant 0 : index
    %c0_57 = arith.constant 0 : index
    %c0_58 = arith.constant 0 : index
    %76 = vector.load %arg6[%c0_56, %c0_57, %c0_58] : memref<1x80x128xf32, #tpu.memory_space<vmem>>, vector<1x80x128xf32>
    %77 = vector.shape_cast %76 : vector<1x80x128xf32> to vector<80x128xf32>
    %78 = vector.shape_cast %75 : vector<80x128xf32> to vector<1x80x128xf32>
    tpu.vector_store %arg6[%c0_56, %c0_57, %c0_58], %78 {strides = array<i32>} : memref<1x80x128xf32, #tpu.memory_space<vmem>>, vector<1x80x128xf32>,
    return
  }
  func.func @transform_0(%arg0: i32) -> (i32, i32, i32) {
    %c0_i32 = arith.constant 0 : i32
    %c0_i32_0 = arith.constant 0 : i32
    %c0_i32_1 = arith.constant 0 : i32
    return %arg0, %c0_i32, %c0_i32_0 : i32, i32, i32
  }
  func.func @transform_1(%arg0: i32) -> (i32, i32, i32) {
    %c0_i32 = arith.constant 0 : i32
    %c0_i32_0 = arith.constant 0 : i32
    %c0_i32_1 = arith.constant 0 : i32
    %c0_i32_2 = arith.constant 0 : i32
    return %c0_i32, %c0_i32_0, %c0_i32_1 : i32, i32, i32
  }
  func.func @transform_2(%arg0: i32) -> (i32, i32) {
    %c0_i32 = arith.constant 0 : i32
    %c0_i32_0 = arith.constant 0 : i32
    %c0_i32_1 = arith.constant 0 : i32
    return %c0_i32, %c0_i32_0 : i32, i32
  }
  func.func @transform_3(%arg0: i32) -> (i32, i32) {
    %c0_i32 = arith.constant 0 : i32
    %c0_i32_0 = arith.constant 0 : i32
    %c0_i32_1 = arith.constant 0 : i32
    return %c0_i32, %c0_i32_0 : i32, i32
  }
  func.func @transform_4(%arg0: i32) -> (i32, i32) {
    %c0_i32 = arith.constant 0 : i32
    %c0_i32_0 = arith.constant 0 : i32
    %c0_i32_1 = arith.constant 0 : i32
    return %c0_i32, %c0_i32_0 : i32, i32
  }
  func.func @transform_5(%arg0: i32) -> (i32, i32, i32) {
    %c0_i32 = arith.constant 0 : i32
    %c0_i32_0 = arith.constant 0 : i32
    %c0_i32_1 = arith.constant 0 : i32
    return %arg0, %c0_i32, %c0_i32_0 : i32, i32, i32
  }
}

</mosaic_0001>

<llo_original>
// kernel: tpu_custom_call.1
$region0: #{tpu_custom_call.1}
  #allocation0 [shape = 'u32[]', space=smem, size = 0x4, offset = 0x4, fixed_abs, tag = 'smem constant byte address 0x4 - core index']
  #allocation1 [shape = 'u32[144,128]{1,0:T(1,128)}', space=vmem, size = 0x12000, scoped, tag = 'internal scratch']
  %s0 = inlined_call_operand.vmem [shape: bf16[2,110,16], index: 0, kind: input, shape index: {}]
  %s1 = inlined_call_operand.vmem [shape: bf16[9,16,32], index: 1, kind: input, shape index: {}]
  %s2 = inlined_call_operand.vmem [shape: f32[1,32], index: 2, kind: input, shape index: {}]
  %s3 = inlined_call_operand.vmem [shape: bf16[32,128], index: 3, kind: input, shape index: {}]
  %s4 = inlined_call_operand.vmem [shape: f32[1,128], index: 4, kind: input, shape index: {}]
  %s5 = inlined_call_operand.hbm [shape: f32[2,80,128], index: 5, kind: output, shape index: {}]
  %s6 = sld [smem:[#allocation0]]
  $region53: #{tpu_custom_call.1} parent=0
    _
  %s8 = ssub.s32 1, %s6
  %s9 = scalar_select 0, %s8, %s6
  $region1: #{tpu_custom_call.1} parent=0
    #allocation2 [shape = 'u8[81920]{0}', space=vmem, size = 0x14000, scoped, tag = 'output window, operand 0']
    #allocation3 [shape = 's32[2]{0}', space=sflag, size = 0x8, scoped, tag = 'scoped memory for tpu_custom_call.1']
    %10 = vsyncpa [#allocation3], 0
    %s11 = scalar_lea.sflag [#allocation3], 1
    %12 = vsyncpa %s11, 0
    loop: start=0, step=1, limit=4
    $region2: #{tpu_custom_call.1} parent=1 // loop_pre_header
      _
    $region3: #{tpu_custom_call.1} parent=1 // loop_header
      %s14 = sphi 0, %s18
      %p15 = scmp.ge.s32.totalorder %s14, 4
      %s24 = sphi 0, %s26
      %s27 = sphi 0, %s24
      %s28 = sphi 0, %s27
      %s44 = sphi 0, %s28
      %s48 = sphi 0, %s48
      %s50 = sphi 0, %s48
      %s51 = sphi 0, %s50
      %s65 = sphi 0, %s51
      %s69 = sphi 0, %s69
      %s71 = sphi 0, %s69
      %s72 = sphi 0, %s71
      %s86 = sphi 0, %s72
      %s90 = sphi 0, %s90
      %s92 = sphi 0, %s90
      %s93 = sphi 0, %s92
      %s107 = sphi 0, %s93
      %s111 = sphi 0, %s111
      %s113 = sphi 0, %s111
      %s114 = sphi 0, %s113
      %s128 = sphi 0, %s114
      %s134 = sphi 0, %s136
      %s137 = sphi 0, %s134
      %s138 = sphi 0, %s137
      %s154 = sphi 0, %s138
    $region4: #{tpu_custom_call.1} parent=1 // loop_header_branch
      %17 = sbr.rel (%p15) target = $region8
    $region5: #{tpu_custom_call.1} parent=1 // loop_body
      %s19 = ssub.s32 %s14, 1
      %s20 = ssub.s32 %s14, 2
      %s21 = sadd.s32 %s14, 1
      %s22 = ssub.s32 %s14, %s21
      %p23 = scmp.eq.s32.totalorder %s22, 0
      %s25 = sadd.s32 %s24, 1
      %s26 = scalar_select %p23, %s24, %s25
      %p29 = pneg %p23
      %p30 = scmp.eq.s32.totalorder %s14, 1
      %p31 = por %p29, %p30
      %p32 = scmp.ne.s32.totalorder %s24, %s27
      %p33 = scmp.eq.s32.totalorder %s14, 0
      %p34 = por %p32, %p33
      %p35 = scmp.ne.s32.totalorder %s24, %s27
      %p36 = scmp.eq.s32.totalorder %s19, 1
      %p37 = por %p35, %p36
      %p38 = scmp.ne.s32.totalorder %s27, %s28
      %p39 = scmp.eq.s32.totalorder %s19, 0
      %p40 = por %p38, %p39
      %p41 = scmp.ne.s32.totalorder %s27, %s28
      %p42 = scmp.eq.s32.totalorder %s20, 1
      %p43 = por %p41, %p42
      %p45 = scmp.ne.s32.totalorder %s28, %s44
      %p46 = scmp.eq.s32.totalorder %s20, 0
      %p47 = por %p45, %p46
      %s49 = sadd.s32 %s48, 1
      %p52 = scmp.eq.s32.totalorder %s14, 1
      %p53 = scmp.ne.s32.totalorder %s48, %s50
      %p54 = scmp.eq.s32.totalorder %s14, 0
      %p55 = por %p53, %p54
      %p56 = scmp.ne.s32.totalorder %s48, %s50
      %p57 = scmp.eq.s32.totalorder %s19, 1
      %p58 = por %p56, %p57
      %p59 = scmp.ne.s32.totalorder %s50, %s51
      %p60 = scmp.eq.s32.totalorder %s19, 0
      %p61 = por %p59, %p60
      %p62 = scmp.ne.s32.totalorder %s50, %s51
      %p63 = scmp.eq.s32.totalorder %s20, 1
      %p64 = por %p62, %p63
      %p66 = scmp.ne.s32.totalorder %s51, %s65
      %p67 = scmp.eq.s32.totalorder %s20, 0
      %p68 = por %p66, %p67
      %s70 = sadd.s32 %s69, 1
      %p73 = scmp.eq.s32.totalorder %s14, 1
      %p74 = scmp.ne.s32.totalorder %s69, %s71
      %p75 = scmp.eq.s32.totalorder %s14, 0
      %p76 = por %p74, %p75
      %p77 = scmp.ne.s32.totalorder %s69, %s71
      %p78 = scmp.eq.s32.totalorder %s19, 1
      %p79 = por %p77, %p78
      %p80 = scmp.ne.s32.totalorder %s71, %s72
      %p81 = scmp.eq.s32.totalorder %s19, 0
      %p82 = por %p80, %p81
      %p83 = scmp.ne.s32.totalorder %s71, %s72
      %p84 = scmp.eq.s32.totalorder %s20, 1
      %p85 = por %p83, %p84
      %p87 = scmp.ne.s32.totalorder %s72, %s86
      %p88 = scmp.eq.s32.totalorder %s20, 0
      %p89 = por %p87, %p88
      %s91 = sadd.s32 %s90, 1
      %p94 = scmp.eq.s32.totalorder %s14, 1
      %p95 = scmp.ne.s32.totalorder %s90, %s92
      %p96 = scmp.eq.s32.totalorder %s14, 0
      %p97 = por %p95, %p96
      %p98 = scmp.ne.s32.totalorder %s90, %s92
      %p99 = scmp.eq.s32.totalorder %s19, 1
      %p100 = por %p98, %p99
      %p101 = scmp.ne.s32.totalorder %s92, %s93
      %p102 = scmp.eq.s32.totalorder %s19, 0
      %p103 = por %p101, %p102
      %p104 = scmp.ne.s32.totalorder %s92, %s93
      %p105 = scmp.eq.s32.totalorder %s20, 1
      %p106 = por %p104, %p105
      %p108 = scmp.ne.s32.totalorder %s93, %s107
      %p109 = scmp.eq.s32.totalorder %s20, 0
      %p110 = por %p108, %p109
      %s112 = sadd.s32 %s111, 1
      %p115 = scmp.eq.s32.totalorder %s14, 1
      %p116 = scmp.ne.s32.totalorder %s111, %s113
      %p117 = scmp.eq.s32.totalorder %s14, 0
      %p118 = por %p116, %p117
      %p119 = scmp.ne.s32.totalorder %s111, %s113
      %p120 = scmp.eq.s32.totalorder %s19, 1
      %p121 = por %p119, %p120
      %p122 = scmp.ne.s32.totalorder %s113, %s114
      %p123 = scmp.eq.s32.totalorder %s19, 0
      %p124 = por %p122, %p123
      %p125 = scmp.ne.s32.totalorder %s113, %s114
      %p126 = scmp.eq.s32.totalorder %s20, 1
      %p127 = por %p125, %p126
      %p129 = scmp.ne.s32.totalorder %s114, %s128
      %p130 = scmp.eq.s32.totalorder %s20, 0
      %p131 = por %p129, %p130
      %s132 = ssub.s32 %s14, %s21
      %p133 = scmp.eq.s32.totalorder %s132, 0
      %s135 = sadd.s32 %s134, 1
      %s136 = scalar_select %p133, %s134, %s135
      %p139 = pneg %p133
      %p140 = scmp.eq.s32.totalorder %s14, 1
      %p141 = por %p139, %p140
      %p142 = scmp.ne.s32.totalorder %s134, %s137
      %p143 = scmp.eq.s32.totalorder %s14, 0
      %p144 = por %p142, %p143
      %p145 = scmp.ne.s32.totalorder %s134, %s137
      %p146 = scmp.eq.s32.totalorder %s19, 1
      %p147 = por %p145, %p146
      %p148 = scmp.ne.s32.totalorder %s137, %s138
      %p149 = scmp.eq.s32.totalorder %s19, 0
      %p150 = por %p148, %p149
      %p151 = scmp.ne.s32.totalorder %s137, %s138
      %p152 = scmp.eq.s32.totalorder %s20, 1
      %p153 = por %p151, %p152
      %p155 = scmp.ne.s32.totalorder %s138, %s154
      %p156 = scmp.eq.s32.totalorder %s20, 0
      %p157 = por %p155, %p156
      %p158 = scmp.le.s32.totalorder 1, %s14
      %p159 = scmp.lt.s32.totalorder %s14, 3
      %p160 = pnand %p158, %p159
      %p161 = pneg %p160
      // Predicated region
      $region9: #{tpu_custom_call.1} parent=5 // pred_check
        _
      $region10: #{tpu_custom_call.1} parent=5 // pred_check_branch
        %163 = sbr.rel (%p160) target = $region12
      $region11: #{tpu_custom_call.1} parent=5 // pred_region
        %s164 = ssub.s32 %s14, 1
        // Predicated region
        $region13: #{tpu_custom_call.1} parent=11 // pred_check
          %p165 = pneg %p61
        $region14: #{tpu_custom_call.1} parent=11 // pred_check_branch
          %167 = sbr.rel (%p165) target = $region16
        $region15: #{tpu_custom_call.1} parent=11 // pred_region
          _
        $region16: #{tpu_custom_call.1} parent=11 // pred_fallthru
          _
        // Predicated region
        $region17: #{tpu_custom_call.1} parent=11 // pred_check
          %p168 = pneg %p82
        $region18: #{tpu_custom_call.1} parent=11 // pred_check_branch
          %170 = sbr.rel (%p168) target = $region20
        $region19: #{tpu_custom_call.1} parent=11 // pred_region
          _
        $region20: #{tpu_custom_call.1} parent=11 // pred_fallthru
          _
        // Predicated region
        $region21: #{tpu_custom_call.1} parent=11 // pred_check
          %p171 = pneg %p103
        $region22: #{tpu_custom_call.1} parent=11 // pred_check_branch
          %173 = sbr.rel (%p171) target = $region24
        $region23: #{tpu_custom_call.1} parent=11 // pred_region
          _
        $region24: #{tpu_custom_call.1} parent=11 // pred_fallthru
          _
        // Predicated region
        $region25: #{tpu_custom_call.1} parent=11 // pred_check
          %p174 = pneg %p124
        $region26: #{tpu_custom_call.1} parent=11 // pred_check_branch
          %176 = sbr.rel (%p174) target = $region28
        $region27: #{tpu_custom_call.1} parent=11 // pred_region
          _
        $region28: #{tpu_custom_call.1} parent=11 // pred_fallthru
          _
      $region12: #{tpu_custom_call.1} parent=5 // pred_fallthru
        _
      %p177 = scmp.lt.s32.totalorder %s14, 2
      // Predicated region
      $region29: #{tpu_custom_call.1} parent=5 // pred_check
        %p178 = pneg %p177
      $region30: #{tpu_custom_call.1} parent=5 // pred_check_branch
        %180 = sbr.rel (%p178) target = $region32
      $region31: #{tpu_custom_call.1} parent=5 // pred_region
        // Predicated region
        $region33: #{tpu_custom_call.1} parent=31 // pred_check
          %p181 = pneg %p34
        $region34: #{tpu_custom_call.1} parent=31 // pred_check_branch
          %183 = sbr.rel (%p181) target = $region36
        $region35: #{tpu_custom_call.1} parent=31 // pred_region
          %p184 = scmp.lt.s32.totalorder %s14, 1
          %s185 = scalar_select %p184, %s14, 1
          %s186 = smul.addr %s185, 14
          %s187 = smul.addr %s186, 4
          %s188 = scalar_lea.vmem %s0, %s187
        $region36: #{tpu_custom_call.1} parent=31 // pred_fallthru
          _
      $region32: #{tpu_custom_call.1} parent=5 // pred_fallthru
        _
      %p189 = scmp.le.s32.totalorder 1, %s14
      %p190 = scmp.lt.s32.totalorder %s14, 3
      %p191 = pnand %p189, %p190
      %p192 = pneg %p191
      // Predicated region
      $region37: #{tpu_custom_call.1} parent=5 // pred_check
        _
      $region38: #{tpu_custom_call.1} parent=5 // pred_check_branch
        %194 = sbr.rel (%p191) target = $region40
      $region39: #{tpu_custom_call.1} parent=5 // pred_region
        %s195 = ssub.s32 %s14, 1
        %p196 = scmp.lt.s32.totalorder %s19, 1
        %s197 = scalar_select %p196, %s19, 1
        %s198 = smul.addr %s197, 14
        %s199 = smul.addr %s198, 4
        %s200 = scalar_lea.vmem %s0, %s199
        %p201 = pneg %p40
        %p202 = pneg %p37
        %p203 = pneg %p61
        %p204 = pneg %p58
        %p205 = pneg %p82
        %p206 = pneg %p79
        %p207 = pneg %p103
        %p208 = pneg %p100
        %p209 = pneg %p124
        %p210 = pneg %p121
        %p211 = pneg %p150
        %p212 = pneg %p147
        %s213 = sand.u32 %s137, 1
        %s214 = scalar_lea.sflag [#allocation3], %s213
        %s215 = sand.u32 %s137, 1
        %s216 = smul.addr %s215, 80
        %s217 = scalar_lea.vmem [#allocation2], %s216
        %p218 = scmp.lt.s32.totalorder %s19, 1
        %s219 = scalar_select %p218, %s19, 1
        %s220 = smul.addr %s219, 14
        %s221 = smul.addr %s220, 4
        %s222 = scalar_lea.vmem %s0, %s221
        %v224 = vld [vmem:[%s222] sm:$0xf]
        %v225 = vld [vmem:[%s222 + $0x4] sm:$0xf]
        %v226 = vld [vmem:[%s222 + $0x8] sm:$0xf]
        %v227 = vld [vmem:[%s222 + $0xc] sm:$0xf]
        %v228 = vld [vmem:[%s222 + $0x10] sm:$0xf]
        %v229 = vld [vmem:[%s222 + $0x14] sm:$0xf]
        %v230 = vld [vmem:[%s222 + $0x18] sm:$0xf]
        %v231 = vld [vmem:[%s222 + $0x1c] sm:$0xf]
        %v232 = vld [vmem:[%s222 + $0x20] sm:$0xf]
        %v233 = vld [vmem:[%s222 + $0x24] sm:$0xf]
        %v234 = vld [vmem:[%s1] sm:$0xf]
        %v235 = vld [vmem:[%s1 + $0x4] sm:$0xf]
        %v236 = vld [vmem:[%s222 + $0x28] sm:$0x1]
        %s237 = scalar_lea.vmem %s1, 8
        %v238 = vld [vmem:[%s237] sm:$0xf]
        %v239 = vld [vmem:[%s237 + $0x4] sm:$0xf]
        %v251 = vunpack.c.l.b16 %v224
        %v252 = vunpack.c.l.b16 %v225
        %v253 = vunpack.c.l.b16 %v226
        %v254 = vunpack.c.l.b16 %v227
        %v255 = vunpack.c.l.b16 %v228
        %v256 = vunpack.c.l.b16 %v229
        %v257 = vunpack.c.l.b16 %v230
        %v258 = vunpack.c.l.b16 %v231
        %v259 = vunpack.c.l.b16 %v232
        %v260 = vunpack.c.l.b16 %v233
        %v261 = vunpack.c.l.b16 %v236
        %v262 = vpack.c.b16 %v252, %v251
        %v263 = vpack.c.b16 %v254, %v253
        %v264 = vpack.c.b16 %v256, %v255
        %v265 = vpack.c.b16 %v258, %v257
        %v266 = vpack.c.b16 %v260, %v259
        %v267 = vpack.c.b16 %v261, %v261
        %vm268 = vsmask.f32 7424
        %v270 = vshrl.u32 %v262, 16
        %v272 = vshll.u32 %v262, 16
        %v274 = vrot.slane %v272, 1
        %v275 = vor.u32 %v270, %v274
        %v277 = vshll.u32 %v263, 16
        %v279 = vrot.slane %v277, 1
        %v280 = vsel %vm268, %v275, %v279
        %v281 = vshrl.u32 %v263, 16
        %v283 = vor.u32 %v281, %v279
        %v285 = vshll.u32 %v264, 16
        %v287 = vrot.slane %v285, 1
        %v288 = vsel %vm268, %v283, %v287
        %v289 = vshrl.u32 %v264, 16
        %v291 = vor.u32 %v289, %v287
        %v293 = vshll.u32 %v265, 16
        %v295 = vrot.slane %v293, 1
        %v296 = vsel %vm268, %v291, %v295
        %v297 = vshrl.u32 %v265, 16
        %v299 = vor.u32 %v297, %v295
        %v301 = vshll.u32 %v266, 16
        %v303 = vrot.slane %v301, 1
        %v304 = vsel %vm268, %v299, %v303
        %v305 = vshrl.u32 %v266, 16
        %v307 = vor.u32 %v305, %v303
        %v309 = vshll.u32 %v267, 16
        %v311 = vrot.slane %v309, 1
        %v312 = vsel %vm268, %v307, %v311
        %v315 = vunpack.c.l.b16 %v238
        %v316 = vunpack.c.l.b16 %v239
        %v317 = vpack.c.b16 %v316, %v315
        %vm319 = vcmask 130048
        %v321 = vsel %vm319, %v280, 0
        %v324 = vsel %vm319, %v288, 0
        %v327 = vsel %vm319, %v296, 0
        %v330 = vsel %vm319, %v304, 0
        %v333 = vsel %vm319, %v312, 0
        %335 = vmatprep.subr.bf16.mxu0 0
        %336 = vmatpush1.bf16.msra.mxu0 %v317
        %337 = vmatprep.subr.bf16.mxu0 0
        %338 = vmatpush1.bf16.msra.mxu0 0
        %339 = vmatprep.subr.bf16.mxu0 0
        %340 = vmatpush1.bf16.msra.mxu0 0
        %341 = vmatprep.subr.bf16.mxu0 0
        %342 = vmatpush1.bf16.msra.mxu0 0
        %343 = vmatprep.subr.bf16.mxu0 0
        %344 = vmatpush1.bf16.msra.mxu0 0
        %345 = vmatprep.subr.bf16.mxu0 0
        %346 = vmatpush1.bf16.msra.mxu0 0
        %347 = vmatprep.subr.bf16.mxu0 0
        %348 = vmatpush1.bf16.msra.mxu0 0
        %349 = vmatprep.subr.bf16.mxu0 0
        %350 = vmatpush1.bf16.msra.mxu0 0
        %351 = vmatprep.subr.bf16.mxu0 0
        %352 = vmatpush1.bf16.msra.mxu0 0
        %353 = vmatprep.subr.bf16.mxu0 0
        %354 = vmatpush1.bf16.msra.mxu0 0
        %355 = vmatprep.subr.bf16.mxu0 0
        %356 = vmatpush1.bf16.msra.mxu0 0
        %357 = vmatprep.subr.bf16.mxu0 0
        %358 = vmatpush1.bf16.msra.mxu0 0
        %359 = vmatprep.subr.bf16.mxu0 0
        %360 = vmatpush1.bf16.msra.mxu0 0
        %361 = vmatprep.subr.bf16.mxu0 0
        %362 = vmatpush1.bf16.msra.mxu0 0
        %363 = vmatprep.subr.bf16.mxu0 0
        %364 = vmatpush1.bf16.msra.mxu0 0
        %365 = vmatprep.subr.bf16.mxu0 0
        %366 = vmatpush1.bf16.msra.mxu0 0
        %367 = vmatprep.mubr.bf16.mxu0 0
        %368 = vmatmul.mubr.bf16.gmra.mrb[0].mxu0 %v321
        %v369 = vpop.f32.mrb[0].mxu0
        %v370 = vadd.f32 0.0, %v369
        %v371 = vpop.f32.mrb[0].mxu0
        %v372 = vpop.f32.mrb[0].mxu0
        %v373 = vadd.f32 0.0, %v372
        %v374 = vpop.f32.mrb[0].mxu0
        %375 = vmatprep.mubr.bf16.mxu0 0
        %376 = vmatmul.mubr.bf16.gmra.mrb[0].mxu0 %v324
        %v377 = vpop.f32.mrb[0].mxu0
        %v378 = vadd.f32 0.0, %v377
        %v379 = vpop.f32.mrb[0].mxu0
        %v380 = vpop.f32.mrb[0].mxu0
        %v381 = vadd.f32 0.0, %v380
        %v382 = vpop.f32.mrb[0].mxu0
        %383 = vmatprep.mubr.bf16.mxu0 0
        %384 = vmatmul.mubr.bf16.gmra.mrb[0].mxu0 %v327
        %v385 = vpop.f32.mrb[0].mxu0
        %v386 = vadd.f32 0.0, %v385
        %v387 = vpop.f32.mrb[0].mxu0
        %v388 = vpop.f32.mrb[0].mxu0
        %v389 = vadd.f32 0.0, %v388
        %v390 = vpop.f32.mrb[0].mxu0
        %391 = vmatprep.mubr.bf16.mxu0 0
        %392 = vmatmul.mubr.bf16.gmra.mrb[0].mxu0 %v330
        %v393 = vpop.f32.mrb[0].mxu0
        %v394 = vadd.f32 0.0, %v393
        %v395 = vpop.f32.mrb[0].mxu0
        %v396 = vpop.f32.mrb[0].mxu0
        %v397 = vadd.f32 0.0, %v396
        %v398 = vpop.f32.mrb[0].mxu0
        %399 = vmatprep.mubr.bf16.mxu0 0
        %400 = vmatmul.mubr.bf16.gmra.mrb[0].mxu0 %v333
        %v401 = vpop.f32.mrb[0].mxu0
        %v402 = vadd.f32 0.0, %v401
        %v403 = vpop.f32.mrb[0].mxu0
        %v404 = vpop.f32.mrb[0].mxu0
        %v405 = vadd.f32 0.0, %v404
        %v406 = vpop.f32.mrb[0].mxu0
        %407 = vdwg.mxu0
        %v410 = vunpack.c.l.b16 %v234
        %v411 = vunpack.c.l.b16 %v235
        %v412 = vpack.c.b16 %v411, %v410
        %v414 = vsel %vm319, %v262, 0
        %v416 = vsel %vm319, %v263, 0
        %v418 = vsel %vm319, %v264, 0
        %v420 = vsel %vm319, %v265, 0
        %v422 = vsel %vm319, %v266, 0
        %424 = vmatprep.subr.bf16.mxu0 0
        %425 = vmatpush1.bf16.msra.mxu0 %v412
        %426 = vmatprep.subr.bf16.mxu0 0
        %427 = vmatpush1.bf16.msra.mxu0 0
        %428 = vmatprep.subr.bf16.mxu0 0
        %429 = vmatpush1.bf16.msra.mxu0 0
        %430 = vmatprep.subr.bf16.mxu0 0
        %431 = vmatpush1.bf16.msra.mxu0 0
        %432 = vmatprep.subr.bf16.mxu0 0
        %433 = vmatpush1.bf16.msra.mxu0 0
        %434 = vmatprep.subr.bf16.mxu0 0
        %435 = vmatpush1.bf16.msra.mxu0 0
        %436 = vmatprep.subr.bf16.mxu0 0
        %437 = vmatpush1.bf16.msra.mxu0 0
        %438 = vmatprep.subr.bf16.mxu0 0
        %439 = vmatpush1.bf16.msra.mxu0 0
        %440 = vmatprep.subr.bf16.mxu0 0
        %441 = vmatpush1.bf16.msra.mxu0 0
        %442 = vmatprep.subr.bf16.mxu0 0
        %443 = vmatpush1.bf16.msra.mxu0 0
        %444 = vmatprep.subr.bf16.mxu0 0
        %445 = vmatpush1.bf16.msra.mxu0 0
        %446 = vmatprep.subr.bf16.mxu0 0
        %447 = vmatpush1.bf16.msra.mxu0 0
        %448 = vmatprep.subr.bf16.mxu0 0
        %449 = vmatpush1.bf16.msra.mxu0 0
        %450 = vmatprep.subr.bf16.mxu0 0
        %451 = vmatpush1.bf16.msra.mxu0 0
        %452 = vmatprep.subr.bf16.mxu0 0
        %453 = vmatpush1.bf16.msra.mxu0 0
        %454 = vmatprep.subr.bf16.mxu0 0
        %455 = vmatpush1.bf16.msra.mxu0 0
        %456 = vmatprep.mubr.bf16.mxu0 0
        %457 = vmatmul.mubr.bf16.gmra.mrb[0].mxu0 %v414
        %v458 = vpop.f32.mrb[0].mxu0
        %v459 = vadd.f32 %v370, %v458
        %v460 = vpop.f32.mrb[0].mxu0
        %v461 = vpop.f32.mrb[0].mxu0
        %v462 = vadd.f32 %v373, %v461
        %v463 = vpop.f32.mrb[0].mxu0
        %464 = vmatprep.mubr.bf16.mxu0 0
        %465 = vmatmul.mubr.bf16.gmra.mrb[0].mxu0 %v416
        %v466 = vpop.f32.mrb[0].mxu0
        %v467 = vadd.f32 %v378, %v466
        %v468 = vpop.f32.mrb[0].mxu0
        %v469 = vpop.f32.mrb[0].mxu0
        %v470 = vadd.f32 %v381, %v469
        %v471 = vpop.f32.mrb[0].mxu0
        %472 = vmatprep.mubr.bf16.mxu0 0
        %473 = vmatmul.mubr.bf16.gmra.mrb[0].mxu0 %v418
        %v474 = vpop.f32.mrb[0].mxu0
        %v475 = vadd.f32 %v386, %v474
        %v476 = vpop.f32.mrb[0].mxu0
        %v477 = vpop.f32.mrb[0].mxu0
        %v478 = vadd.f32 %v389, %v477
        %v479 = vpop.f32.mrb[0].mxu0
        %480 = vmatprep.mubr.bf16.mxu0 0
        %481 = vmatmul.mubr.bf16.gmra.mrb[0].mxu0 %v420
        %v482 = vpop.f32.mrb[0].mxu0
        %v483 = vadd.f32 %v394, %v482
        %v484 = vpop.f32.mrb[0].mxu0
        %v485 = vpop.f32.mrb[0].mxu0
        %v486 = vadd.f32 %v397, %v485
        %v487 = vpop.f32.mrb[0].mxu0
        %488 = vmatprep.mubr.bf16.mxu0 0
        %489 = vmatmul.mubr.bf16.gmra.mrb[0].mxu0 %v422
        %v490 = vpop.f32.mrb[0].mxu0
        %v491 = vadd.f32 %v402, %v490
        %v492 = vpop.f32.mrb[0].mxu0
        %v493 = vpop.f32.mrb[0].mxu0
        %v494 = vadd.f32 %v405, %v493
        %v495 = vpop.f32.mrb[0].mxu0
        %496 = vdwg.mxu0
        %v497 = vld [vmem:[%s222] sm:$0xe]
        %s498 = scalar_lea.vmem %s1, 16
        %v499 = vld [vmem:[%s498] sm:$0xf]
        %v500 = vld [vmem:[%s498 + $0x4] sm:$0xf]
        %v502 = vunpack.c.l.b16 %v497
        %v503 = vpack.c.b16 %v252, %v502
        %vm504 = vcmask 1046528
        %v505 = vrot.slane %v503, 1
        %v506 = vrot.slane %v263, 1
        %v507 = vsel %vm504, %v505, %v506
        %v508 = vrot.slane %v264, 1
        %v509 = vsel %vm504, %v506, %v508
        %v510 = vrot.slane %v265, 1
        %v511 = vsel %vm504, %v508, %v510
        %v512 = vrot.slane %v266, 1
        %v513 = vsel %vm504, %v510, %v512
        %v514 = vrot.slane %v267, 1
        %v515 = vsel %vm504, %v512, %v514
        %v518 = vunpack.c.l.b16 %v499
        %v519 = vunpack.c.l.b16 %v500
        %v520 = vpack.c.b16 %v519, %v518
        %v523 = vsel %vm319, %v507, 0
        %v526 = vsel %vm319, %v509, 0
        %v529 = vsel %vm319, %v511, 0
        %v532 = vsel %vm319, %v513, 0
        %v535 = vsel %vm319, %v515, 0
        %537 = vmatprep.subr.bf16.mxu0 0
        %538 = vmatpush1.bf16.msra.mxu0 %v520
        %539 = vmatprep.subr.bf16.mxu0 0
        %540 = vmatpush1.bf16.msra.mxu0 0
        %541 = vmatprep.subr.bf16.mxu0 0
        %542 = vmatpush1.bf16.msra.mxu0 0
        %543 = vmatprep.subr.bf16.mxu0 0
        %544 = vmatpush1.bf16.msra.mxu0 0
        %545 = vmatprep.subr.bf16.mxu0 0
        %546 = vmatpush1.bf16.msra.mxu0 0
        %547 = vmatprep.subr.bf16.mxu0 0
        %548 = vmatpush1.bf16.msra.mxu0 0
        %549 = vmatprep.subr.bf16.mxu0 0
        %550 = vmatpush1.bf16.msra.mxu0 0
        %551 = vmatprep.subr.bf16.mxu0 0
        %552 = vmatpush1.bf16.msra.mxu0 0
        %553 = vmatprep.subr.bf16.mxu0 0
        %554 = vmatpush1.bf16.msra.mxu0 0
        %555 = vmatprep.subr.bf16.mxu0 0
        %556 = vmatpush1.bf16.msra.mxu0 0
        %557 = vmatprep.subr.bf16.mxu0 0
        %558 = vmatpush1.bf16.msra.mxu0 0
        %559 = vmatprep.subr.bf16.mxu0 0
        %560 = vmatpush1.bf16.msra.mxu0 0
        %561 = vmatprep.subr.bf16.mxu0 0
        %562 = vmatpush1.bf16.msra.mxu0 0
        %563 = vmatprep.subr.bf16.mxu0 0
        %564 = vmatpush1.bf16.msra.mxu0 0
        %565 = vmatprep.subr.bf16.mxu0 0
        %566 = vmatpush1.bf16.msra.mxu0 0
        %567 = vmatprep.subr.bf16.mxu0 0
        %568 = vmatpush1.bf16.msra.mxu0 0
        %569 = vmatprep.mubr.bf16.mxu0 0
        %570 = vmatmul.mubr.bf16.gmra.mrb[0].mxu0 %v523
        %v571 = vpop.f32.mrb[0].mxu0
        %v572 = vadd.f32 0.0, %v571
        %v573 = vpop.f32.mrb[0].mxu0
        %v574 = vpop.f32.mrb[0].mxu0
        %v575 = vadd.f32 0.0, %v574
        %v576 = vpop.f32.mrb[0].mxu0
        %577 = vmatprep.mubr.bf16.mxu0 0
        %578 = vmatmul.mubr.bf16.gmra.mrb[0].mxu0 %v526
        %v579 = vpop.f32.mrb[0].mxu0
        %v580 = vadd.f32 0.0, %v579
        %v581 = vpop.f32.mrb[0].mxu0
        %v582 = vpop.f32.mrb[0].mxu0
        %v583 = vadd.f32 0.0, %v582
        %v584 = vpop.f32.mrb[0].mxu0
        %585 = vmatprep.mubr.bf16.mxu0 0
        %586 = vmatmul.mubr.bf16.gmra.mrb[0].mxu0 %v529
        %v587 = vpop.f32.mrb[0].mxu0
        %v588 = vadd.f32 0.0, %v587
        %v589 = vpop.f32.mrb[0].mxu0
        %v590 = vpop.f32.mrb[0].mxu0
        %v591 = vadd.f32 0.0, %v590
        %v592 = vpop.f32.mrb[0].mxu0
        %593 = vmatprep.mubr.bf16.mxu0 0
        %594 = vmatmul.mubr.bf16.gmra.mrb[0].mxu0 %v532
        %v595 = vpop.f32.mrb[0].mxu0
        %v596 = vadd.f32 0.0, %v595
        %v597 = vpop.f32.mrb[0].mxu0
        %v598 = vpop.f32.mrb[0].mxu0
        %v599 = vadd.f32 0.0, %v598
        %v600 = vpop.f32.mrb[0].mxu0
        %601 = vmatprep.mubr.bf16.mxu0 0
        %602 = vmatmul.mubr.bf16.gmra.mrb[0].mxu0 %v535
        %v603 = vpop.f32.mrb[0].mxu0
        %v604 = vadd.f32 0.0, %v603
        %v605 = vpop.f32.mrb[0].mxu0
        %v606 = vpop.f32.mrb[0].mxu0
        %v607 = vadd.f32 0.0, %v606
        %v608 = vpop.f32.mrb[0].mxu0
        %609 = vdwg.mxu0
        %v610 = vadd.f32 %v459, %v572
        %v611 = vadd.f32 %v462, %v575
        %v612 = vadd.f32 %v467, %v580
        %v613 = vadd.f32 %v470, %v583
        %v614 = vadd.f32 %v475, %v588
        %v615 = vadd.f32 %v478, %v591
        %v616 = vadd.f32 %v483, %v596
        %v617 = vadd.f32 %v486, %v599
        %v618 = vadd.f32 %v491, %v604
        %v619 = vadd.f32 %v494, %v607
        %v620 = vld [vmem:[%s222 + $0x4] sm:$0xe]
        %v621 = vld [vmem:[%s222 + $0x8] sm:$0xf]
        %v622 = vld [vmem:[%s222 + $0xc] sm:$0xf]
        %v623 = vld [vmem:[%s222 + $0x10] sm:$0xf]
        %v624 = vld [vmem:[%s222 + $0x14] sm:$0xf]
        %v625 = vld [vmem:[%s222 + $0x18] sm:$0xf]
        %v626 = vld [vmem:[%s222 + $0x1c] sm:$0xf]
        %v627 = vld [vmem:[%s222 + $0x20] sm:$0xf]
        %v628 = vld [vmem:[%s222 + $0x24] sm:$0xf]
        %v629 = vld [vmem:[%s222 + $0x28] sm:$0xf]
        %v630 = vld [vmem:[%s222 + $0x2c] sm:$0x1]
        %s631 = scalar_lea.vmem %s1, 24
        %v632 = vld [vmem:[%s631] sm:$0xf]
        %v633 = vld [vmem:[%s631 + $0x4] sm:$0xf]
        %v645 = vunpack.c.l.b16 %v620
        %v646 = vunpack.c.l.b16 %v621
        %v647 = vunpack.c.l.b16 %v622
        %v648 = vunpack.c.l.b16 %v623
        %v649 = vunpack.c.l.b16 %v624
        %v650 = vunpack.c.l.b16 %v625
        %v651 = vunpack.c.l.b16 %v626
        %v652 = vunpack.c.l.b16 %v627
        %v653 = vunpack.c.l.b16 %v628
        %v654 = vunpack.c.l.b16 %v629
        %v655 = vunpack.c.l.b16 %v630
        %v656 = vpack.c.b16 %v646, %v645
        %v657 = vpack.c.b16 %v648, %v647
        %v658 = vpack.c.b16 %v650, %v649
        %v659 = vpack.c.b16 %v652, %v651
        %v660 = vpack.c.b16 %v654, %v653
        %v661 = vpack.c.b16 %v655, %v655
        %v662 = vrot.slane %v656, 1
        %v663 = vrot.slane %v657, 1
        %v664 = vsel %vm504, %v662, %v663
        %v665 = vrot.slane %v658, 1
        %v666 = vsel %vm504, %v663, %v665
        %v667 = vrot.slane %v659, 1
        %v668 = vsel %vm504, %v665, %v667
        %v669 = vrot.slane %v660, 1
        %v670 = vsel %vm504, %v667, %v669
        %v671 = vrot.slane %v661, 1
        %v672 = vsel %vm504, %v669, %v671
        %v675 = vunpack.c.l.b16 %v632
        %v676 = vunpack.c.l.b16 %v633
        %v677 = vpack.c.b16 %v676, %v675
        %v680 = vsel %vm319, %v664, 0
        %v683 = vsel %vm319, %v666, 0
        %v686 = vsel %vm319, %v668, 0
        %v689 = vsel %vm319, %v670, 0
        %v692 = vsel %vm319, %v672, 0
        %694 = vmatprep.subr.bf16.mxu0 0
        %695 = vmatpush1.bf16.msra.mxu0 %v677
        %696 = vmatprep.subr.bf16.mxu0 0
        %697 = vmatpush1.bf16.msra.mxu0 0
        %698 = vmatprep.subr.bf16.mxu0 0
        %699 = vmatpush1.bf16.msra.mxu0 0
        %700 = vmatprep.subr.bf16.mxu0 0
        %701 = vmatpush1.bf16.msra.mxu0 0
        %702 = vmatprep.subr.bf16.mxu0 0
        %703 = vmatpush1.bf16.msra.mxu0 0
        %704 = vmatprep.subr.bf16.mxu0 0
        %705 = vmatpush1.bf16.msra.mxu0 0
        %706 = vmatprep.subr.bf16.mxu0 0
        %707 = vmatpush1.bf16.msra.mxu0 0
        %708 = vmatprep.subr.bf16.mxu0 0
        %709 = vmatpush1.bf16.msra.mxu0 0
        %710 = vmatprep.subr.bf16.mxu0 0
        %711 = vmatpush1.bf16.msra.mxu0 0
        %712 = vmatprep.subr.bf16.mxu0 0
        %713 = vmatpush1.bf16.msra.mxu0 0
        %714 = vmatprep.subr.bf16.mxu0 0
        %715 = vmatpush1.bf16.msra.mxu0 0
        %716 = vmatprep.subr.bf16.mxu0 0
        %717 = vmatpush1.bf16.msra.mxu0 0
        %718 = vmatprep.subr.bf16.mxu0 0
        %719 = vmatpush1.bf16.msra.mxu0 0
        %720 = vmatprep.subr.bf16.mxu0 0
        %721 = vmatpush1.bf16.msra.mxu0 0
        %722 = vmatprep.subr.bf16.mxu0 0
        %723 = vmatpush1.bf16.msra.mxu0 0
        %724 = vmatprep.subr.bf16.mxu0 0
        %725 = vmatpush1.bf16.msra.mxu0 0
        %726 = vmatprep.mubr.bf16.mxu0 0
        %727 = vmatmul.mubr.bf16.gmra.mrb[0].mxu0 %v680
        %v728 = vpop.f32.mrb[0].mxu0
        %v729 = vadd.f32 0.0, %v728
        %v730 = vpop.f32.mrb[0].mxu0
        %v731 = vpop.f32.mrb[0].mxu0
        %v732 = vadd.f32 0.0, %v731
        %v733 = vpop.f32.mrb[0].mxu0
        %734 = vmatprep.mubr.bf16.mxu0 0
        %735 = vmatmul.mubr.bf16.gmra.mrb[0].mxu0 %v683
        %v736 = vpop.f32.mrb[0].mxu0
        %v737 = vadd.f32 0.0, %v736
        %v738 = vpop.f32.mrb[0].mxu0
        %v739 = vpop.f32.mrb[0].mxu0
        %v740 = vadd.f32 0.0, %v739
        %v741 = vpop.f32.mrb[0].mxu0
        %742 = vmatprep.mubr.bf16.mxu0 0
        %743 = vmatmul.mubr.bf16.gmra.mrb[0].mxu0 %v686
        %v744 = vpop.f32.mrb[0].mxu0
        %v745 = vadd.f32 0.0, %v744
        %v746 = vpop.f32.mrb[0].mxu0
        %v747 = vpop.f32.mrb[0].mxu0
        %v748 = vadd.f32 0.0, %v747
        %v749 = vpop.f32.mrb[0].mxu0
        %750 = vmatprep.mubr.bf16.mxu0 0
        %751 = vmatmul.mubr.bf16.gmra.mrb[0].mxu0 %v689
        %v752 = vpop.f32.mrb[0].mxu0
        %v753 = vadd.f32 0.0, %v752
        %v754 = vpop.f32.mrb[0].mxu0
        %v755 = vpop.f32.mrb[0].mxu0
        %v756 = vadd.f32 0.0, %v755
        %v757 = vpop.f32.mrb[0].mxu0
        %758 = vmatprep.mubr.bf16.mxu0 0
        %759 = vmatmul.mubr.bf16.gmra.mrb[0].mxu0 %v692
        %v760 = vpop.f32.mrb[0].mxu0
        %v761 = vadd.f32 0.0, %v760
        %v762 = vpop.f32.mrb[0].mxu0
        %v763 = vpop.f32.mrb[0].mxu0
        %v764 = vadd.f32 0.0, %v763
        %v765 = vpop.f32.mrb[0].mxu0
        %766 = vdwg.mxu0
        %v767 = vadd.f32 %v610, %v729
        %v768 = vadd.f32 %v611, %v732
        %v769 = vadd.f32 %v612, %v737
        %v770 = vadd.f32 %v613, %v740
        %v771 = vadd.f32 %v614, %v745
        %v772 = vadd.f32 %v615, %v748
        %v773 = vadd.f32 %v616, %v753
        %v774 = vadd.f32 %v617, %v756
        %v775 = vadd.f32 %v618, %v761
        %v776 = vadd.f32 %v619, %v764
        %v777 = vld [vmem:[%s222 + $0x2c] sm:$0x3]
        %s778 = scalar_lea.vmem %s1, 32
        %v779 = vld [vmem:[%s778] sm:$0xf]
        %v780 = vld [vmem:[%s778 + $0x4] sm:$0xf]
        %v782 = vunpack.c.l.b16 %v777
        %v783 = vpack.c.b16 %v782, %v782
        %vm784 = vsmask.f32 6400
        %v786 = vshrl.u32 %v656, 16
        %v788 = vrot.slane %v786, 1
        %v789 = vshll.u32 %v656, 16
        %v791 = vrot.slane %v789, 2
        %v792 = vor.u32 %v788, %v791
        %v794 = vshrl.u32 %v657, 16
        %v796 = vrot.slane %v794, 1
        %v797 = vshll.u32 %v657, 16
        %v799 = vrot.slane %v797, 2
        %v800 = vor.u32 %v796, %v799
        %v801 = vsel %vm784, %v792, %v800
        %v803 = vshrl.u32 %v658, 16
        %v805 = vrot.slane %v803, 1
        %v806 = vshll.u32 %v658, 16
        %v808 = vrot.slane %v806, 2
        %v809 = vor.u32 %v805, %v808
        %v810 = vsel %vm784, %v800, %v809
        %v812 = vshrl.u32 %v659, 16
        %v814 = vrot.slane %v812, 1
        %v815 = vshll.u32 %v659, 16
        %v817 = vrot.slane %v815, 2
        %v818 = vor.u32 %v814, %v817
        %v819 = vsel %vm784, %v809, %v818
        %v821 = vshrl.u32 %v660, 16
        %v823 = vrot.slane %v821, 1
        %v824 = vshll.u32 %v660, 16
        %v826 = vrot.slane %v824, 2
        %v827 = vor.u32 %v823, %v826
        %v828 = vsel %vm784, %v818, %v827
        %v830 = vshrl.u32 %v783, 16
        %v832 = vrot.slane %v830, 1
        %v833 = vshll.u32 %v783, 16
        %v835 = vrot.slane %v833, 2
        %v836 = vor.u32 %v832, %v835
        %v837 = vsel %vm784, %v827, %v836
        %v840 = vunpack.c.l.b16 %v779
        %v841 = vunpack.c.l.b16 %v780
        %v842 = vpack.c.b16 %v841, %v840
        %v845 = vsel %vm319, %v801, 0
        %v848 = vsel %vm319, %v810, 0
        %v851 = vsel %vm319, %v819, 0
        %v854 = vsel %vm319, %v828, 0
        %v857 = vsel %vm319, %v837, 0
        %859 = vmatprep.subr.bf16.mxu0 0
        %860 = vmatpush1.bf16.msra.mxu0 %v842
        %861 = vmatprep.subr.bf16.mxu0 0
        %862 = vmatpush1.bf16.msra.mxu0 0
        %863 = vmatprep.subr.bf16.mxu0 0
        %864 = vmatpush1.bf16.msra.mxu0 0
        %865 = vmatprep.subr.bf16.mxu0 0
        %866 = vmatpush1.bf16.msra.mxu0 0
        %867 = vmatprep.subr.bf16.mxu0 0
        %868 = vmatpush1.bf16.msra.mxu0 0
        %869 = vmatprep.subr.bf16.mxu0 0
        %870 = vmatpush1.bf16.msra.mxu0 0
        %871 = vmatprep.subr.bf16.mxu0 0
        %872 = vmatpush1.bf16.msra.mxu0 0
        %873 = vmatprep.subr.bf16.mxu0 0
        %874 = vmatpush1.bf16.msra.mxu0 0
        %875 = vmatprep.subr.bf16.mxu0 0
        %876 = vmatpush1.bf16.msra.mxu0 0
        %877 = vmatprep.subr.bf16.mxu0 0
        %878 = vmatpush1.bf16.msra.mxu0 0
        %879 = vmatprep.subr.bf16.mxu0 0
        %880 = vmatpush1.bf16.msra.mxu0 0
        %881 = vmatprep.subr.bf16.mxu0 0
        %882 = vmatpush1.bf16.msra.mxu0 0
        %883 = vmatprep.subr.bf16.mxu0 0
        %884 = vmatpush1.bf16.msra.mxu0 0
        %885 = vmatprep.subr.bf16.mxu0 0
        %886 = vmatpush1.bf16.msra.mxu0 0
        %887 = vmatprep.subr.bf16.mxu0 0
        %888 = vmatpush1.bf16.msra.mxu0 0
        %889 = vmatprep.subr.bf16.mxu0 0
        %890 = vmatpush1.bf16.msra.mxu0 0
        %891 = vmatprep.mubr.bf16.mxu0 0
        %892 = vmatmul.mubr.bf16.gmra.mrb[0].mxu0 %v845
        %v893 = vpop.f32.mrb[0].mxu0
        %v894 = vadd.f32 0.0, %v893
        %v895 = vpop.f32.mrb[0].mxu0
        %v896 = vpop.f32.mrb[0].mxu0
        %v897 = vadd.f32 0.0, %v896
        %v898 = vpop.f32.mrb[0].mxu0
        %899 = vmatprep.mubr.bf16.mxu0 0
        %900 = vmatmul.mubr.bf16.gmra.mrb[0].mxu0 %v848
        %v901 = vpop.f32.mrb[0].mxu0
        %v902 = vadd.f32 0.0, %v901
        %v903 = vpop.f32.mrb[0].mxu0
        %v904 = vpop.f32.mrb[0].mxu0
        %v905 = vadd.f32 0.0, %v904
        %v906 = vpop.f32.mrb[0].mxu0
        %907 = vmatprep.mubr.bf16.mxu0 0
        %908 = vmatmul.mubr.bf16.gmra.mrb[0].mxu0 %v851
        %v909 = vpop.f32.mrb[0].mxu0
        %v910 = vadd.f32 0.0, %v909
        %v911 = vpop.f32.mrb[0].mxu0
        %v912 = vpop.f32.mrb[0].mxu0
        %v913 = vadd.f32 0.0, %v912
        %v914 = vpop.f32.mrb[0].mxu0
        %915 = vmatprep.mubr.bf16.mxu0 0
        %916 = vmatmul.mubr.bf16.gmra.mrb[0].mxu0 %v854
        %v917 = vpop.f32.mrb[0].mxu0
        %v918 = vadd.f32 0.0, %v917
        %v919 = vpop.f32.mrb[0].mxu0
        %v920 = vpop.f32.mrb[0].mxu0
        %v921 = vadd.f32 0.0, %v920
        %v922 = vpop.f32.mrb[0].mxu0
        %923 = vmatprep.mubr.bf16.mxu0 0
        %924 = vmatmul.mubr.bf16.gmra.mrb[0].mxu0 %v857
        %v925 = vpop.f32.mrb[0].mxu0
        %v926 = vadd.f32 0.0, %v925
        %v927 = vpop.f32.mrb[0].mxu0
        %v928 = vpop.f32.mrb[0].mxu0
        %v929 = vadd.f32 0.0, %v928
        %v930 = vpop.f32.mrb[0].mxu0
        %931 = vdwg.mxu0
        %v932 = vadd.f32 %v767, %v894
        %v933 = vadd.f32 %v768, %v897
        %v934 = vadd.f32 %v769, %v902
        %v935 = vadd.f32 %v770, %v905
        %v936 = vadd.f32 %v771, %v910
        %v937 = vadd.f32 %v772, %v913
        %v938 = vadd.f32 %v773, %v918
        %v939 = vadd.f32 %v774, %v921
        %v940 = vadd.f32 %v775, %v926
        %v941 = vadd.f32 %v776, %v929
        %v942 = vld [vmem:[%s222 + $0x4] sm:$0xc]
        %s943 = scalar_lea.vmem %s1, 40
        %v944 = vld [vmem:[%s943] sm:$0xf]
        %v945 = vld [vmem:[%s943 + $0x4] sm:$0xf]
        %v947 = vunpack.c.l.b16 %v942
        %v948 = vpack.c.b16 %v646, %v947
        %vm949 = vcmask 1045504
        %v950 = vrot.slane %v948, 2
        %v951 = vrot.slane %v657, 2
        %v952 = vsel %vm949, %v950, %v951
        %v953 = vrot.slane %v658, 2
        %v954 = vsel %vm949, %v951, %v953
        %v955 = vrot.slane %v659, 2
        %v956 = vsel %vm949, %v953, %v955
        %v957 = vrot.slane %v660, 2
        %v958 = vsel %vm949, %v955, %v957
        %v959 = vrot.slane %v783, 2
        %v960 = vsel %vm949, %v957, %v959
        %v963 = vunpack.c.l.b16 %v944
        %v964 = vunpack.c.l.b16 %v945
        %v965 = vpack.c.b16 %v964, %v963
        %v968 = vsel %vm319, %v952, 0
        %v971 = vsel %vm319, %v954, 0
        %v974 = vsel %vm319, %v956, 0
        %v977 = vsel %vm319, %v958, 0
        %v980 = vsel %vm319, %v960, 0
        %982 = vmatprep.subr.bf16.mxu0 0
        %983 = vmatpush1.bf16.msra.mxu0 %v965
        %984 = vmatprep.subr.bf16.mxu0 0
        %985 = vmatpush1.bf16.msra.mxu0 0
        %986 = vmatprep.subr.bf16.mxu0 0
        %987 = vmatpush1.bf16.msra.mxu0 0
        %988 = vmatprep.subr.bf16.mxu0 0
        %989 = vmatpush1.bf16.msra.mxu0 0
        %990 = vmatprep.subr.bf16.mxu0 0
        %991 = vmatpush1.bf16.msra.mxu0 0
        %992 = vmatprep.subr.bf16.mxu0 0
        %993 = vmatpush1.bf16.msra.mxu0 0
        %994 = vmatprep.subr.bf16.mxu0 0
        %995 = vmatpush1.bf16.msra.mxu0 0
        %996 = vmatprep.subr.bf16.mxu0 0
        %997 = vmatpush1.bf16.msra.mxu0 0
        %998 = vmatprep.subr.bf16.mxu0 0
        %999 = vmatpush1.bf16.msra.mxu0 0
        %1000 = vmatprep.subr.bf16.mxu0 0
        %1001 = vmatpush1.bf16.msra.mxu0 0
        %1002 = vmatprep.subr.bf16.mxu0 0
        %1003 = vmatpush1.bf16.msra.mxu0 0
        %1004 = vmatprep.subr.bf16.mxu0 0
        %1005 = vmatpush1.bf16.msra.mxu0 0
        %1006 = vmatprep.subr.bf16.mxu0 0
        %1007 = vmatpush1.bf16.msra.mxu0 0
        %1008 = vmatprep.subr.bf16.mxu0 0
        %1009 = vmatpush1.bf16.msra.mxu0 0
        %1010 = vmatprep.subr.bf16.mxu0 0
        %1011 = vmatpush1.bf16.msra.mxu0 0
        %1012 = vmatprep.subr.bf16.mxu0 0
        %1013 = vmatpush1.bf16.msra.mxu0 0
        %1014 = vmatprep.mubr.bf16.mxu0 0
        %1015 = vmatmul.mubr.bf16.gmra.mrb[0].mxu0 %v968
        %v1016 = vpop.f32.mrb[0].mxu0
        %v1017 = vadd.f32 0.0, %v1016
        %v1018 = vpop.f32.mrb[0].mxu0
        %v1019 = vpop.f32.mrb[0].mxu0
        %v1020 = vadd.f32 0.0, %v1019
        %v1021 = vpop.f32.mrb[0].mxu0
        %1022 = vmatprep.mubr.bf16.mxu0 0
        %1023 = vmatmul.mubr.bf16.gmra.mrb[0].mxu0 %v971
        %v1024 = vpop.f32.mrb[0].mxu0
        %v1025 = vadd.f32 0.0, %v1024
        %v1026 = vpop.f32.mrb[0].mxu0
        %v1027 = vpop.f32.mrb[0].mxu0
        %v1028 = vadd.f32 0.0, %v1027
        %v1029 = vpop.f32.mrb[0].mxu0
        %1030 = vmatprep.mubr.bf16.mxu0 0
        %1031 = vmatmul.mubr.bf16.gmra.mrb[0].mxu0 %v974
        %v1032 = vpop.f32.mrb[0].mxu0
        %v1033 = vadd.f32 0.0, %v1032
        %v1034 = vpop.f32.mrb[0].mxu0
        %v1035 = vpop.f32.mrb[0].mxu0
        %v1036 = vadd.f32 0.0, %v1035
        %v1037 = vpop.f32.mrb[0].mxu0
        %1038 = vmatprep.mubr.bf16.mxu0 0
        %1039 = vmatmul.mubr.bf16.gmra.mrb[0].mxu0 %v977
        %v1040 = vpop.f32.mrb[0].mxu0
        %v1041 = vadd.f32 0.0, %v1040
        %v1042 = vpop.f32.mrb[0].mxu0
        %v1043 = vpop.f32.mrb[0].mxu0
        %v1044 = vadd.f32 0.0, %v1043
        %v1045 = vpop.f32.mrb[0].mxu0
        %1046 = vmatprep.mubr.bf16.mxu0 0
        %1047 = vmatmul.mubr.bf16.gmra.mrb[0].mxu0 %v980
        %v1048 = vpop.f32.mrb[0].mxu0
        %v1049 = vadd.f32 0.0, %v1048
        %v1050 = vpop.f32.mrb[0].mxu0
        %v1051 = vpop.f32.mrb[0].mxu0
        %v1052 = vadd.f32 0.0, %v1051
        %v1053 = vpop.f32.mrb[0].mxu0
        %1054 = vdwg.mxu0
        %v1055 = vadd.f32 %v932, %v1017
        %v1056 = vadd.f32 %v933, %v1020
        %v1057 = vadd.f32 %v934, %v1025
        %v1058 = vadd.f32 %v935, %v1028
        %v1059 = vadd.f32 %v936, %v1033
        %v1060 = vadd.f32 %v937, %v1036
        %v1061 = vadd.f32 %v938, %v1041
        %v1062 = vadd.f32 %v939, %v1044
        %v1063 = vadd.f32 %v940, %v1049
        %v1064 = vadd.f32 %v941, %v1052
        %v1065 = vld [vmem:[%s222 + $0x8] sm:$0xc]
        %v1066 = vld [vmem:[%s222 + $0xc] sm:$0xf]
        %v1067 = vld [vmem:[%s222 + $0x10] sm:$0xf]
        %v1068 = vld [vmem:[%s222 + $0x14] sm:$0xf]
        %v1069 = vld [vmem:[%s222 + $0x18] sm:$0xf]
        %v1070 = vld [vmem:[%s222 + $0x1c] sm:$0xf]
        %v1071 = vld [vmem:[%s222 + $0x20] sm:$0xf]
        %v1072 = vld [vmem:[%s222 + $0x24] sm:$0xf]
        %v1073 = vld [vmem:[%s222 + $0x28] sm:$0xf]
        %v1074 = vld [vmem:[%s222 + $0x2c] sm:$0xf]
        %v1075 = vld [vmem:[%s222 + $0x30] sm:$0x3]
        %s1076 = scalar_lea.vmem %s1, 48
        %v1077 = vld [vmem:[%s1076] sm:$0xf]
        %v1078 = vld [vmem:[%s1076 + $0x4] sm:$0xf]
        %v1090 = vunpack.c.l.b16 %v1065
        %v1091 = vunpack.c.l.b16 %v1066
        %v1092 = vunpack.c.l.b16 %v1067
        %v1093 = vunpack.c.l.b16 %v1068
        %v1094 = vunpack.c.l.b16 %v1069
        %v1095 = vunpack.c.l.b16 %v1070
        %v1096 = vunpack.c.l.b16 %v1071
        %v1097 = vunpack.c.l.b16 %v1072
        %v1098 = vunpack.c.l.b16 %v1073
        %v1099 = vunpack.c.l.b16 %v1074
        %v1100 = vunpack.c.l.b16 %v1075
        %v1101 = vpack.c.b16 %v1091, %v1090
        %v1102 = vpack.c.b16 %v1093, %v1092
        %v1103 = vpack.c.b16 %v1095, %v1094
        %v1104 = vpack.c.b16 %v1097, %v1096
        %v1105 = vpack.c.b16 %v1099, %v1098
        %v1106 = vpack.c.b16 %v1100, %v1100
        %v1107 = vrot.slane %v1101, 2
        %v1108 = vrot.slane %v1102, 2
        %v1109 = vsel %vm949, %v1107, %v1108
        %v1110 = vrot.slane %v1103, 2
        %v1111 = vsel %vm949, %v1108, %v1110
        %v1112 = vrot.slane %v1104, 2
        %v1113 = vsel %vm949, %v1110, %v1112
        %v1114 = vrot.slane %v1105, 2
        %v1115 = vsel %vm949, %v1112, %v1114
        %v1116 = vrot.slane %v1106, 2
        %v1117 = vsel %vm949, %v1114, %v1116
        %v1120 = vunpack.c.l.b16 %v1077
        %v1121 = vunpack.c.l.b16 %v1078
        %v1122 = vpack.c.b16 %v1121, %v1120
        %v1125 = vsel %vm319, %v1109, 0
        %v1128 = vsel %vm319, %v1111, 0
        %v1131 = vsel %vm319, %v1113, 0
        %v1134 = vsel %vm319, %v1115, 0
        %v1137 = vsel %vm319, %v1117, 0
        %1139 = vmatprep.subr.bf16.mxu0 0
        %1140 = vmatpush1.bf16.msra.mxu0 %v1122
        %1141 = vmatprep.subr.bf16.mxu0 0
        %1142 = vmatpush1.bf16.msra.mxu0 0
        %1143 = vmatprep.subr.bf16.mxu0 0
        %1144 = vmatpush1.bf16.msra.mxu0 0
        %1145 = vmatprep.subr.bf16.mxu0 0
        %1146 = vmatpush1.bf16.msra.mxu0 0
        %1147 = vmatprep.subr.bf16.mxu0 0
        %1148 = vmatpush1.bf16.msra.mxu0 0
        %1149 = vmatprep.subr.bf16.mxu0 0
        %1150 = vmatpush1.bf16.msra.mxu0 0
        %1151 = vmatprep.subr.bf16.mxu0 0
        %1152 = vmatpush1.bf16.msra.mxu0 0
        %1153 = vmatprep.subr.bf16.mxu0 0
        %1154 = vmatpush1.bf16.msra.mxu0 0
        %1155 = vmatprep.subr.bf16.mxu0 0
        %1156 = vmatpush1.bf16.msra.mxu0 0
        %1157 = vmatprep.subr.bf16.mxu0 0
        %1158 = vmatpush1.bf16.msra.mxu0 0
        %1159 = vmatprep.subr.bf16.mxu0 0
        %1160 = vmatpush1.bf16.msra.mxu0 0
        %1161 = vmatprep.subr.bf16.mxu0 0
        %1162 = vmatpush1.bf16.msra.mxu0 0
        %1163 = vmatprep.subr.bf16.mxu0 0
        %1164 = vmatpush1.bf16.msra.mxu0 0
        %1165 = vmatprep.subr.bf16.mxu0 0
        %1166 = vmatpush1.bf16.msra.mxu0 0
        %1167 = vmatprep.subr.bf16.mxu0 0
        %1168 = vmatpush1.bf16.msra.mxu0 0
        %1169 = vmatprep.subr.bf16.mxu0 0
        %1170 = vmatpush1.bf16.msra.mxu0 0
        %1171 = vmatprep.mubr.bf16.mxu0 0
        %1172 = vmatmul.mubr.bf16.gmra.mrb[0].mxu0 %v1125
        %v1173 = vpop.f32.mrb[0].mxu0
        %v1174 = vadd.f32 0.0, %v1173
        %v1175 = vpop.f32.mrb[0].mxu0
        %v1176 = vpop.f32.mrb[0].mxu0
        %v1177 = vadd.f32 0.0, %v1176
        %v1178 = vpop.f32.mrb[0].mxu0
        %1179 = vmatprep.mubr.bf16.mxu0 0
        %1180 = vmatmul.mubr.bf16.gmra.mrb[0].mxu0 %v1128
        %v1181 = vpop.f32.mrb[0].mxu0
        %v1182 = vadd.f32 0.0, %v1181
        %v1183 = vpop.f32.mrb[0].mxu0
        %v1184 = vpop.f32.mrb[0].mxu0
        %v1185 = vadd.f32 0.0, %v1184
        %v1186 = vpop.f32.mrb[0].mxu0
        %1187 = vmatprep.mubr.bf16.mxu0 0
        %1188 = vmatmul.mubr.bf16.gmra.mrb[0].mxu0 %v1131
        %v1189 = vpop.f32.mrb[0].mxu0
        %v1190 = vadd.f32 0.0, %v1189
        %v1191 = vpop.f32.mrb[0].mxu0
        %v1192 = vpop.f32.mrb[0].mxu0
        %v1193 = vadd.f32 0.0, %v1192
        %v1194 = vpop.f32.mrb[0].mxu0
        %1195 = vmatprep.mubr.bf16.mxu0 0
        %1196 = vmatmul.mubr.bf16.gmra.mrb[0].mxu0 %v1134
        %v1197 = vpop.f32.mrb[0].mxu0
        %v1198 = vadd.f32 0.0, %v1197
        %v1199 = vpop.f32.mrb[0].mxu0
        %v1200 = vpop.f32.mrb[0].mxu0
        %v1201 = vadd.f32 0.0, %v1200
        %v1202 = vpop.f32.mrb[0].mxu0
        %1203 = vmatprep.mubr.bf16.mxu0 0
        %1204 = vmatmul.mubr.bf16.gmra.mrb[0].mxu0 %v1137
        %v1205 = vpop.f32.mrb[0].mxu0
        %v1206 = vadd.f32 0.0, %v1205
        %v1207 = vpop.f32.mrb[0].mxu0
        %v1208 = vpop.f32.mrb[0].mxu0
        %v1209 = vadd.f32 0.0, %v1208
        %v1210 = vpop.f32.mrb[0].mxu0
        %1211 = vdwg.mxu0
        %v1212 = vadd.f32 %v1055, %v1174
        %v1213 = vadd.f32 %v1056, %v1177
        %v1214 = vadd.f32 %v1057, %v1182
        %v1215 = vadd.f32 %v1058, %v1185
        %v1216 = vadd.f32 %v1059, %v1190
        %v1217 = vadd.f32 %v1060, %v1193
        %v1218 = vadd.f32 %v1061, %v1198
        %v1219 = vadd.f32 %v1062, %v1201
        %v1220 = vadd.f32 %v1063, %v1206
        %v1221 = vadd.f32 %v1064, %v1209
        %v1222 = vld [vmem:[%s222 + $0x30] sm:$0x7]
        %s1223 = scalar_lea.vmem %s1, 56
        %v1224 = vld [vmem:[%s1223] sm:$0xf]
        %v1225 = vld [vmem:[%s1223 + $0x4] sm:$0xf]
        %v1227 = vunpack.c.l.b16 %v1222
        %v1228 = vpack.c.b16 %v1227, %v1227
        %vm1229 = vsmask.f32 5376
        %v1231 = vshrl.u32 %v1101, 16
        %v1233 = vrot.slane %v1231, 2
        %v1234 = vshll.u32 %v1101, 16
        %v1236 = vrot.slane %v1234, 3
        %v1237 = vor.u32 %v1233, %v1236
        %v1239 = vshrl.u32 %v1102, 16
        %v1241 = vrot.slane %v1239, 2
        %v1242 = vshll.u32 %v1102, 16
        %v1244 = vrot.slane %v1242, 3
        %v1245 = vor.u32 %v1241, %v1244
        %v1246 = vsel %vm1229, %v1237, %v1245
        %v1248 = vshrl.u32 %v1103, 16
        %v1250 = vrot.slane %v1248, 2
        %v1251 = vshll.u32 %v1103, 16
        %v1253 = vrot.slane %v1251, 3
        %v1254 = vor.u32 %v1250, %v1253
        %v1255 = vsel %vm1229, %v1245, %v1254
        %v1257 = vshrl.u32 %v1104, 16
        %v1259 = vrot.slane %v1257, 2
        %v1260 = vshll.u32 %v1104, 16
        %v1262 = vrot.slane %v1260, 3
        %v1263 = vor.u32 %v1259, %v1262
        %v1264 = vsel %vm1229, %v1254, %v1263
        %v1266 = vshrl.u32 %v1105, 16
        %v1268 = vrot.slane %v1266, 2
        %v1269 = vshll.u32 %v1105, 16
        %v1271 = vrot.slane %v1269, 3
        %v1272 = vor.u32 %v1268, %v1271
        %v1273 = vsel %vm1229, %v1263, %v1272
        %v1275 = vshrl.u32 %v1228, 16
        %v1277 = vrot.slane %v1275, 2
        %v1278 = vshll.u32 %v1228, 16
        %v1280 = vrot.slane %v1278, 3
        %v1281 = vor.u32 %v1277, %v1280
        %v1282 = vsel %vm1229, %v1272, %v1281
        %v1285 = vunpack.c.l.b16 %v1224
        %v1286 = vunpack.c.l.b16 %v1225
        %v1287 = vpack.c.b16 %v1286, %v1285
        %v1290 = vsel %vm319, %v1246, 0
        %v1293 = vsel %vm319, %v1255, 0
        %v1296 = vsel %vm319, %v1264, 0
        %v1299 = vsel %vm319, %v1273, 0
        %v1302 = vsel %vm319, %v1282, 0
        %1304 = vmatprep.subr.bf16.mxu0 0
        %1305 = vmatpush1.bf16.msra.mxu0 %v1287
        %1306 = vmatprep.subr.bf16.mxu0 0
        %1307 = vmatpush1.bf16.msra.mxu0 0
        %1308 = vmatprep.subr.bf16.mxu0 0
        %1309 = vmatpush1.bf16.msra.mxu0 0
        %1310 = vmatprep.subr.bf16.mxu0 0
        %1311 = vmatpush1.bf16.msra.mxu0 0
        %1312 = vmatprep.subr.bf16.mxu0 0
        %1313 = vmatpush1.bf16.msra.mxu0 0
        %1314 = vmatprep.subr.bf16.mxu0 0
        %1315 = vmatpush1.bf16.msra.mxu0 0
        %1316 = vmatprep.subr.bf16.mxu0 0
        %1317 = vmatpush1.bf16.msra.mxu0 0
        %1318 = vmatprep.subr.bf16.mxu0 0
        %1319 = vmatpush1.bf16.msra.mxu0 0
        %1320 = vmatprep.subr.bf16.mxu0 0
        %1321 = vmatpush1.bf16.msra.mxu0 0
        %1322 = vmatprep.subr.bf16.mxu0 0
        %1323 = vmatpush1.bf16.msra.mxu0 0
        %1324 = vmatprep.subr.bf16.mxu0 0
        %1325 = vmatpush1.bf16.msra.mxu0 0
        %1326 = vmatprep.subr.bf16.mxu0 0
        %1327 = vmatpush1.bf16.msra.mxu0 0
        %1328 = vmatprep.subr.bf16.mxu0 0
        %1329 = vmatpush1.bf16.msra.mxu0 0
        %1330 = vmatprep.subr.bf16.mxu0 0
        %1331 = vmatpush1.bf16.msra.mxu0 0
        %1332 = vmatprep.subr.bf16.mxu0 0
        %1333 = vmatpush1.bf16.msra.mxu0 0
        %1334 = vmatprep.subr.bf16.mxu0 0
        %1335 = vmatpush1.bf16.msra.mxu0 0
        %1336 = vmatprep.mubr.bf16.mxu0 0
        %1337 = vmatmul.mubr.bf16.gmra.mrb[0].mxu0 %v1290
        %v1338 = vpop.f32.mrb[0].mxu0
        %v1339 = vadd.f32 0.0, %v1338
        %v1340 = vpop.f32.mrb[0].mxu0
        %v1341 = vpop.f32.mrb[0].mxu0
        %v1342 = vadd.f32 0.0, %v1341
        %v1343 = vpop.f32.mrb[0].mxu0
        %1344 = vmatprep.mubr.bf16.mxu0 0
        %1345 = vmatmul.mubr.bf16.gmra.mrb[0].mxu0 %v1293
        %v1346 = vpop.f32.mrb[0].mxu0
        %v1347 = vadd.f32 0.0, %v1346
        %v1348 = vpop.f32.mrb[0].mxu0
        %v1349 = vpop.f32.mrb[0].mxu0
        %v1350 = vadd.f32 0.0, %v1349
        %v1351 = vpop.f32.mrb[0].mxu0
        %1352 = vmatprep.mubr.bf16.mxu0 0
        %1353 = vmatmul.mubr.bf16.gmra.mrb[0].mxu0 %v1296
        %v1354 = vpop.f32.mrb[0].mxu0
        %v1355 = vadd.f32 0.0, %v1354
        %v1356 = vpop.f32.mrb[0].mxu0
        %v1357 = vpop.f32.mrb[0].mxu0
        %v1358 = vadd.f32 0.0, %v1357
        %v1359 = vpop.f32.mrb[0].mxu0
        %1360 = vmatprep.mubr.bf16.mxu0 0
        %1361 = vmatmul.mubr.bf16.gmra.mrb[0].mxu0 %v1299
        %v1362 = vpop.f32.mrb[0].mxu0
        %v1363 = vadd.f32 0.0, %v1362
        %v1364 = vpop.f32.mrb[0].mxu0
        %v1365 = vpop.f32.mrb[0].mxu0
        %v1366 = vadd.f32 0.0, %v1365
        %v1367 = vpop.f32.mrb[0].mxu0
        %1368 = vmatprep.mubr.bf16.mxu0 0
        %1369 = vmatmul.mubr.bf16.gmra.mrb[0].mxu0 %v1302
        %v1370 = vpop.f32.mrb[0].mxu0
        %v1371 = vadd.f32 0.0, %v1370
        %v1372 = vpop.f32.mrb[0].mxu0
        %v1373 = vpop.f32.mrb[0].mxu0
        %v1374 = vadd.f32 0.0, %v1373
        %v1375 = vpop.f32.mrb[0].mxu0
        %1376 = vdwg.mxu0
        %v1377 = vadd.f32 %v1212, %v1339
        %v1378 = vadd.f32 %v1213, %v1342
        %v1379 = vadd.f32 %v1214, %v1347
        %v1380 = vadd.f32 %v1215, %v1350
        %v1381 = vadd.f32 %v1216, %v1355
        %v1382 = vadd.f32 %v1217, %v1358
        %v1383 = vadd.f32 %v1218, %v1363
        %v1384 = vadd.f32 %v1219, %v1366
        %v1385 = vadd.f32 %v1220, %v1371
        %v1386 = vadd.f32 %v1221, %v1374
        %v1387 = vld [vmem:[%s222 + $0x8] sm:$0x8]
        %s1388 = scalar_lea.vmem %s1, 64
        %v1389 = vld [vmem:[%s1388] sm:$0xf]
        %v1390 = vld [vmem:[%s1388 + $0x4] sm:$0xf]
        %v1392 = vunpack.c.l.b16 %v1387
        %v1393 = vpack.c.b16 %v1091, %v1392
        %vm1394 = vcmask 1044480
        %v1395 = vrot.slane %v1393, 3
        %v1396 = vrot.slane %v1102, 3
        %v1397 = vsel %vm1394, %v1395, %v1396
        %v1398 = vrot.slane %v1103, 3
        %v1399 = vsel %vm1394, %v1396, %v1398
        %v1400 = vrot.slane %v1104, 3
        %v1401 = vsel %vm1394, %v1398, %v1400
        %v1402 = vrot.slane %v1105, 3
        %v1403 = vsel %vm1394, %v1400, %v1402
        %v1404 = vrot.slane %v1228, 3
        %v1405 = vsel %vm1394, %v1402, %v1404
        %v1408 = vunpack.c.l.b16 %v1389
        %v1409 = vunpack.c.l.b16 %v1390
        %v1410 = vpack.c.b16 %v1409, %v1408
        %v1413 = vsel %vm319, %v1397, 0
        %v1416 = vsel %vm319, %v1399, 0
        %v1419 = vsel %vm319, %v1401, 0
        %v1422 = vsel %vm319, %v1403, 0
        %v1425 = vsel %vm319, %v1405, 0
        %1427 = vmatprep.subr.bf16.mxu0 0
        %1428 = vmatpush1.bf16.msra.mxu0 %v1410
        %1429 = vmatprep.subr.bf16.mxu0 0
        %1430 = vmatpush1.bf16.msra.mxu0 0
        %1431 = vmatprep.subr.bf16.mxu0 0
        %1432 = vmatpush1.bf16.msra.mxu0 0
        %1433 = vmatprep.subr.bf16.mxu0 0
        %1434 = vmatpush1.bf16.msra.mxu0 0
        %1435 = vmatprep.subr.bf16.mxu0 0
        %1436 = vmatpush1.bf16.msra.mxu0 0
        %1437 = vmatprep.subr.bf16.mxu0 0
        %1438 = vmatpush1.bf16.msra.mxu0 0
        %1439 = vmatprep.subr.bf16.mxu0 0
        %1440 = vmatpush1.bf16.msra.mxu0 0
        %1441 = vmatprep.subr.bf16.mxu0 0
        %1442 = vmatpush1.bf16.msra.mxu0 0
        %1443 = vmatprep.subr.bf16.mxu0 0
        %1444 = vmatpush1.bf16.msra.mxu0 0
        %1445 = vmatprep.subr.bf16.mxu0 0
        %1446 = vmatpush1.bf16.msra.mxu0 0
        %1447 = vmatprep.subr.bf16.mxu0 0
        %1448 = vmatpush1.bf16.msra.mxu0 0
        %1449 = vmatprep.subr.bf16.mxu0 0
        %1450 = vmatpush1.bf16.msra.mxu0 0
        %1451 = vmatprep.subr.bf16.mxu0 0
        %1452 = vmatpush1.bf16.msra.mxu0 0
        %1453 = vmatprep.subr.bf16.mxu0 0
        %1454 = vmatpush1.bf16.msra.mxu0 0
        %1455 = vmatprep.subr.bf16.mxu0 0
        %1456 = vmatpush1.bf16.msra.mxu0 0
        %1457 = vmatprep.subr.bf16.mxu0 0
        %1458 = vmatpush1.bf16.msra.mxu0 0
        %1459 = vmatprep.mubr.bf16.mxu0 0
        %1460 = vmatmul.mubr.bf16.gmra.mrb[0].mxu0 %v1413
        %v1461 = vpop.f32.mrb[0].mxu0
        %v1462 = vadd.f32 0.0, %v1461
        %v1463 = vpop.f32.mrb[0].mxu0
        %v1464 = vpop.f32.mrb[0].mxu0
        %v1465 = vadd.f32 0.0, %v1464
        %v1466 = vpop.f32.mrb[0].mxu0
        %1467 = vmatprep.mubr.bf16.mxu0 0
        %1468 = vmatmul.mubr.bf16.gmra.mrb[0].mxu0 %v1416
        %v1469 = vpop.f32.mrb[0].mxu0
        %v1470 = vadd.f32 0.0, %v1469
        %v1471 = vpop.f32.mrb[0].mxu0
        %v1472 = vpop.f32.mrb[0].mxu0
        %v1473 = vadd.f32 0.0, %v1472
        %v1474 = vpop.f32.mrb[0].mxu0
        %1475 = vmatprep.mubr.bf16.mxu0 0
        %1476 = vmatmul.mubr.bf16.gmra.mrb[0].mxu0 %v1419
        %v1477 = vpop.f32.mrb[0].mxu0
        %v1478 = vadd.f32 0.0, %v1477
        %v1479 = vpop.f32.mrb[0].mxu0
        %v1480 = vpop.f32.mrb[0].mxu0
        %v1481 = vadd.f32 0.0, %v1480
        %v1482 = vpop.f32.mrb[0].mxu0
        %1483 = vmatprep.mubr.bf16.mxu0 0
        %1484 = vmatmul.mubr.bf16.gmra.mrb[0].mxu0 %v1422
        %v1485 = vpop.f32.mrb[0].mxu0
        %v1486 = vadd.f32 0.0, %v1485
        %v1487 = vpop.f32.mrb[0].mxu0
        %v1488 = vpop.f32.mrb[0].mxu0
        %v1489 = vadd.f32 0.0, %v1488
        %v1490 = vpop.f32.mrb[0].mxu0
        %1491 = vmatprep.mubr.bf16.mxu0 0
        %1492 = vmatmul.mubr.bf16.gmra.mrb[0].mxu0 %v1425
        %v1493 = vpop.f32.mrb[0].mxu0
        %v1494 = vadd.f32 0.0, %v1493
        %v1495 = vpop.f32.mrb[0].mxu0
        %v1496 = vpop.f32.mrb[0].mxu0
        %v1497 = vadd.f32 0.0, %v1496
        %v1498 = vpop.f32.mrb[0].mxu0
        %1499 = vdwg.mxu0
        %v1500 = vadd.f32 %v1377, %v1462
        %v1501 = vadd.f32 %v1378, %v1465
        %v1502 = vadd.f32 %v1379, %v1470
        %v1503 = vadd.f32 %v1380, %v1473
        %v1504 = vadd.f32 %v1381, %v1478
        %v1505 = vadd.f32 %v1382, %v1481
        %v1506 = vadd.f32 %v1383, %v1486
        %v1507 = vadd.f32 %v1384, %v1489
        %v1508 = vadd.f32 %v1385, %v1494
        %v1509 = vadd.f32 %v1386, %v1497
        %v1510 = vld [vmem:[%s2] sm:$0x1]
        %v1512 = vlaneseq
        %v1513 = vshrl.u32 %v1512, 7
        %v1514 = vsub.s32 0, %v1513
        %v1515 = vrot.slane %v1510, %v1514
        %v1517 = vadd.f32 %v1500, %v1515
        %v1518 = vadd.f32 %v1501, %v1515
        %v1519 = vadd.f32 %v1502, %v1515
        %v1520 = vadd.f32 %v1503, %v1515
        %v1521 = vadd.f32 %v1504, %v1515
        %v1522 = vadd.f32 %v1505, %v1515
        %v1523 = vadd.f32 %v1506, %v1515
        %v1524 = vadd.f32 %v1507, %v1515
        %v1525 = vadd.f32 %v1508, %v1515
        %v1526 = vadd.f32 %v1509, %v1515
        %v1527 = vmax.f32 %v1517, 0.0
        %v1528 = vmax.f32 %v1518, 0.0
        %v1529 = vmax.f32 %v1519, 0.0
        %v1530 = vmax.f32 %v1520, 0.0
        %v1531 = vmax.f32 %v1521, 0.0
        %v1532 = vmax.f32 %v1522, 0.0
        %v1533 = vmax.f32 %v1523, 0.0
        %v1534 = vmax.f32 %v1524, 0.0
        %v1535 = vmax.f32 %v1525, 0.0
        %v1536 = vmax.f32 %v1526, 0.0
        %v1537 = vpack.c.bf16 %v1528, %v1527
        %v1538 = vpack.c.bf16 %v1530, %v1529
        %v1539 = vpack.c.bf16 %v1532, %v1531
        %v1540 = vpack.c.bf16 %v1534, %v1533
        %v1541 = vpack.c.bf16 %v1536, %v1535
        %v1542 = vld [vmem:[%s3] sm:$0xf]
        %v1543 = vld [vmem:[%s3 + $0x4] sm:$0xf]
        %v1544 = vld [vmem:[%s3 + $0x8] sm:$0xf]
        %v1545 = vld [vmem:[%s3 + $0xc] sm:$0xf]
        %v1546 = vld [vmem:[%s4] sm:$0x1]
        %v1548 = vlaneseq
        %v1549 = vshrl.u32 %v1548, 7
        %v1550 = vsub.s32 0, %v1549
        %v1551 = vrot.slane %v1546, %v1550
        %v1557 = vunpack.c.l.b16 %v1542
        %v1558 = vunpack.c.l.b16 %v1543
        %v1559 = vunpack.c.l.b16 %v1544
        %v1560 = vunpack.c.l.b16 %v1545
        %v1561 = vpack.c.b16 %v1558, %v1557
        %v1562 = vpack.c.b16 %v1560, %v1559
        %vm1565 = vcmask 261120
        %v1567 = vsel %vm1565, %v1537, 0
        %v1570 = vsel %vm1565, %v1538, 0
        %v1573 = vsel %vm1565, %v1539, 0
        %v1576 = vsel %vm1565, %v1540, 0
        %v1579 = vsel %vm1565, %v1541, 0
        %1581 = vmatprep.subr.bf16.mxu0 0
        %1582 = vmatpush1.bf16.msra.mxu0 %v1561
        %1583 = vmatprep.subr.bf16.mxu0 0
        %1584 = vmatpush1.bf16.msra.mxu0 %v1562
        %1585 = vmatprep.subr.bf16.mxu0 0
        %1586 = vmatpush1.bf16.msra.mxu0 0
        %1587 = vmatprep.subr.bf16.mxu0 0
        %1588 = vmatpush1.bf16.msra.mxu0 0
        %1589 = vmatprep.subr.bf16.mxu0 0
        %1590 = vmatpush1.bf16.msra.mxu0 0
        %1591 = vmatprep.subr.bf16.mxu0 0
        %1592 = vmatpush1.bf16.msra.mxu0 0
        %1593 = vmatprep.subr.bf16.mxu0 0
        %1594 = vmatpush1.bf16.msra.mxu0 0
        %1595 = vmatprep.subr.bf16.mxu0 0
        %1596 = vmatpush1.bf16.msra.mxu0 0
        %1597 = vmatprep.subr.bf16.mxu0 0
        %1598 = vmatpush1.bf16.msra.mxu0 0
        %1599 = vmatprep.subr.bf16.mxu0 0
        %1600 = vmatpush1.bf16.msra.mxu0 0
        %1601 = vmatprep.subr.bf16.mxu0 0
        %1602 = vmatpush1.bf16.msra.mxu0 0
        %1603 = vmatprep.subr.bf16.mxu0 0
        %1604 = vmatpush1.bf16.msra.mxu0 0
        %1605 = vmatprep.subr.bf16.mxu0 0
        %1606 = vmatpush1.bf16.msra.mxu0 0
        %1607 = vmatprep.subr.bf16.mxu0 0
        %1608 = vmatpush1.bf16.msra.mxu0 0
        %1609 = vmatprep.subr.bf16.mxu0 0
        %1610 = vmatpush1.bf16.msra.mxu0 0
        %1611 = vmatprep.subr.bf16.mxu0 0
        %1612 = vmatpush1.bf16.msra.mxu0 0
        %1613 = vmatprep.mubr.bf16.mxu0 0
        %1614 = vmatmul.mubr.bf16.gmra.mrb[0].mxu0 %v1567
        %v1615 = vpop.f32.mrb[0].mxu0
        %v1616 = vadd.f32 %v1551, %v1615
        %v1617 = vpop.f32.mrb[0].mxu0
        %v1618 = vpop.f32.mrb[0].mxu0
        %v1619 = vadd.f32 %v1551, %v1618
        %v1620 = vpop.f32.mrb[0].mxu0
        %1621 = vmatprep.mubr.bf16.mxu0 0
        %1622 = vmatmul.mubr.bf16.gmra.mrb[0].mxu0 %v1570
        %v1623 = vpop.f32.mrb[0].mxu0
        %v1624 = vadd.f32 %v1551, %v1623
        %v1625 = vpop.f32.mrb[0].mxu0
        %v1626 = vpop.f32.mrb[0].mxu0
        %v1627 = vadd.f32 %v1551, %v1626
        %v1628 = vpop.f32.mrb[0].mxu0
        %1629 = vmatprep.mubr.bf16.mxu0 0
        %1630 = vmatmul.mubr.bf16.gmra.mrb[0].mxu0 %v1573
        %v1631 = vpop.f32.mrb[0].mxu0
        %v1632 = vadd.f32 %v1551, %v1631
        %v1633 = vpop.f32.mrb[0].mxu0
        %v1634 = vpop.f32.mrb[0].mxu0
        %v1635 = vadd.f32 %v1551, %v1634
        %v1636 = vpop.f32.mrb[0].mxu0
        %1637 = vmatprep.mubr.bf16.mxu0 0
        %1638 = vmatmul.mubr.bf16.gmra.mrb[0].mxu0 %v1576
        %v1639 = vpop.f32.mrb[0].mxu0
        %v1640 = vadd.f32 %v1551, %v1639
        %v1641 = vpop.f32.mrb[0].mxu0
        %v1642 = vpop.f32.mrb[0].mxu0
        %v1643 = vadd.f32 %v1551, %v1642
        %v1644 = vpop.f32.mrb[0].mxu0
        %1645 = vmatprep.mubr.bf16.mxu0 0
        %1646 = vmatmul.mubr.bf16.gmra.mrb[0].mxu0 %v1579
        %v1647 = vpop.f32.mrb[0].mxu0
        %v1648 = vadd.f32 %v1551, %v1647
        %v1649 = vpop.f32.mrb[0].mxu0
        %v1650 = vpop.f32.mrb[0].mxu0
        %v1651 = vadd.f32 %v1551, %v1650
        %v1652 = vpop.f32.mrb[0].mxu0
        %1653 = vdwg.mxu0
        %v1654 = vlaneseq
        %v1655 = vand.u32 %v1654, 127
        %vm1656 = vcmp.ge.s32.totalorder %v1655, 54
        %vm1657 = vcmp.lt.s32.totalorder %v1655, 63
        %vm1658 = vmand %vm1656, %vm1657
        %v1659 = vxor.u32 %v1616, 2147483648
        %v1660 = vxor.u32 %v1619, 2147483648
        %v1661 = vxor.u32 %v1624, 2147483648
        %v1662 = vxor.u32 %v1627, 2147483648
        %v1663 = vxor.u32 %v1632, 2147483648
        %v1664 = vxor.u32 %v1635, 2147483648
        %v1665 = vxor.u32 %v1640, 2147483648
        %v1666 = vxor.u32 %v1643, 2147483648
        %v1667 = vxor.u32 %v1648, 2147483648
        %v1668 = vxor.u32 %v1651, 2147483648
        %v1669 = vmul.f32 %v1659, 1.442695
        %v1670 = vpow.pop %v1669
        %v1671 = vmul.f32 %v1660, 1.442695
        %v1672 = vpow.pop %v1671
        %v1673 = vmul.f32 %v1661, 1.442695
        %v1674 = vpow.pop %v1673
        %v1675 = vmul.f32 %v1662, 1.442695
        %v1676 = vpow.pop %v1675
        %v1677 = vmul.f32 %v1663, 1.442695
        %v1678 = vpow.pop %v1677
        %v1679 = vmul.f32 %v1664, 1.442695
        %v1680 = vpow.pop %v1679
        %v1681 = vmul.f32 %v1665, 1.442695
        %v1682 = vpow.pop %v1681
        %v1683 = vmul.f32 %v1666, 1.442695
        %v1684 = vpow.pop %v1683
        %v1685 = vmul.f32 %v1667, 1.442695
        %v1686 = vpow.pop %v1685
        %v1687 = vmul.f32 %v1668, 1.442695
        %v1688 = vpow.pop %v1687
        %v1689 = vadd.f32 %v1670, 1.0
        %v1690 = vadd.f32 %v1672, 1.0
        %v1691 = vadd.f32 %v1674, 1.0
        %v1692 = vadd.f32 %v1676, 1.0
        %v1693 = vadd.f32 %v1678, 1.0
        %v1694 = vadd.f32 %v1680, 1.0
        %v1695 = vadd.f32 %v1682, 1.0
        %v1696 = vadd.f32 %v1684, 1.0
        %v1697 = vadd.f32 %v1686, 1.0
        %v1698 = vadd.f32 %v1688, 1.0
        %v1699 = vrcp.pop %v1689
        %v1700 = vmul.f32 1.0, %v1699
        %v1701 = vrcp.pop %v1690
        %v1702 = vmul.f32 1.0, %v1701
        %v1703 = vrcp.pop %v1691
        %v1704 = vmul.f32 1.0, %v1703
        %v1705 = vrcp.pop %v1692
        %v1706 = vmul.f32 1.0, %v1705
        %v1707 = vrcp.pop %v1693
        %v1708 = vmul.f32 1.0, %v1707
        %v1709 = vrcp.pop %v1694
        %v1710 = vmul.f32 1.0, %v1709
        %v1711 = vrcp.pop %v1695
        %v1712 = vmul.f32 1.0, %v1711
        %v1713 = vrcp.pop %v1696
        %v1714 = vmul.f32 1.0, %v1713
        %v1715 = vrcp.pop %v1697
        %v1716 = vmul.f32 1.0, %v1715
        %v1717 = vrcp.pop %v1698
        %v1718 = vmul.f32 1.0, %v1717
        %v1719 = vsel %vm1658, %v1700, %v1616
        %v1720 = vsel %vm1658, %v1702, %v1619
        %v1721 = vsel %vm1658, %v1704, %v1624
        %v1722 = vsel %vm1658, %v1706, %v1627
        %v1723 = vsel %vm1658, %v1708, %v1632
        %v1724 = vsel %vm1658, %v1710, %v1635
        %v1725 = vsel %vm1658, %v1712, %v1640
        %v1726 = vsel %vm1658, %v1714, %v1643
        %v1727 = vsel %vm1658, %v1716, %v1648
        %v1728 = vsel %vm1658, %v1718, %v1651
        %1729 = vst [vmem:[%s217] sm:$0xff] %v1719
        %1730 = vst [vmem:[%s217 + $0x8] sm:$0xff] %v1720
        %1731 = vst [vmem:[%s217 + $0x10] sm:$0xff] %v1721
        %1732 = vst [vmem:[%s217 + $0x18] sm:$0xff] %v1722
        %1733 = vst [vmem:[%s217 + $0x20] sm:$0xff] %v1723
        %1734 = vst [vmem:[%s217 + $0x28] sm:$0xff] %v1724
        %1735 = vst [vmem:[%s217 + $0x30] sm:$0xff] %v1725
        %1736 = vst [vmem:[%s217 + $0x38] sm:$0xff] %v1726
        %1737 = vst [vmem:[%s217 + $0x40] sm:$0xff] %v1727
        %1738 = vst [vmem:[%s217 + $0x48] sm:$0xff] %v1728
        %s1739 = sand.u32 %s137, 1
        %s1740 = scalar_lea.sflag [#allocation3], %s1739
        %s1741 = sand.u32 %s137, 1
        %s1742 = smul.addr %s1741, 80
        %s1743 = scalar_lea.vmem [#allocation2], %s1742
        // Predicated region
        $region41: #{tpu_custom_call.1} parent=39 // pred_check
          %p1744 = pneg %p147
        $region42: #{tpu_custom_call.1} parent=39 // pred_check_branch
          %1746 = sbr.rel (%p1744) target = $region44
        $region43: #{tpu_custom_call.1} parent=39 // pred_region
          %s1748 = ssub.s32 1280, 1280
          %1749 = vsyncadd %s1740, %s1748
          %s1750 = smul.addr %s19, 10
          %s1751 = smul.addr %s1750, 128
          %s1752 = scalar_lea.hbm %s5, %s1751
          %s1753 = sshll.u32 %s1743, 4
          %s1754 = int_to_ptr.vmem [resolvable:$true] %s1753
          %1759 = dma.vmem_to_hbm [thread:$0]  %s1754, 1280, %s1752, %s1740, 128, 128, 8
        $region44: #{tpu_custom_call.1} parent=39 // pred_fallthru
          _
      $region40: #{tpu_custom_call.1} parent=5 // pred_fallthru
        _
      %p1760 = scmp.le.s32.totalorder 2, %s14
      // Predicated region
      $region45: #{tpu_custom_call.1} parent=5 // pred_check
        %p1761 = pneg %p1760
      $region46: #{tpu_custom_call.1} parent=5 // pred_check_branch
        %1763 = sbr.rel (%p1761) target = $region48
      $region47: #{tpu_custom_call.1} parent=5 // pred_region
        %s1764 = ssub.s32 %s14, 2
        // Predicated region
        $region49: #{tpu_custom_call.1} parent=47 // pred_check
          %p1765 = pneg %p153
        $region50: #{tpu_custom_call.1} parent=47 // pred_check_branch
          %1767 = sbr.rel (%p1765) target = $region52
        $region51: #{tpu_custom_call.1} parent=47 // pred_region
          %s1768 = sand.u32 %s138, 1
          %s1769 = scalar_lea.sflag [#allocation3], %s1768
          %s1770 = sand.u32 %s138, 1
          %s1771 = smul.addr %s1770, 80
          %s1772 = scalar_lea.vmem [#allocation2], %s1771
          %1773 = dma.done %s1769, 1280
        $region52: #{tpu_custom_call.1} parent=47 // pred_fallthru
          _
      $region48: #{tpu_custom_call.1} parent=5 // pred_fallthru
        _
    $region6: #{tpu_custom_call.1} parent=1 // loop_footer
      %s18 = sadd.s32 1, %s14
    $region7: #{tpu_custom_call.1} parent=1 // loop_footer_branch
      %13 = sbr.rel target = $region3
    $region8: #{tpu_custom_call.1} parent=1 // loop_exit
      _
    %1774 = vsyncpa [#allocation3], 1
    %s1775 = scalar_lea.sflag [#allocation3], 1
    %1776 = vsyncpa %s1775, 1

</llo_original>
